<compile_context>
chip_gen: v6e
topology: v6e:2x2x1
jax: 0.10.0
libtpu: 0.0.40
codegen_flags: <defaults>
</compile_context>

<pallas_src>
import jax
import jax.numpy as jnp
from jax.experimental import pallas as pl
from jax.experimental.pallas import tpu as pltpu

IN_FEATURES = 12 * 8 * 8   # 768
HIDDEN = 512
OUT_FEATURES = 1
BN_EPS = 1e-5


def _chessbot_kernel(x_ref, w1_ref, c1_ref, w2_ref, c2_ref, w3_ref, b3_ref,
                     o_ref):
    """Fused eval-mode MLP forward for one batch tile.

    x_ref  : (TM, 768)  f32    flattened board planes (cast to bf16 in-kernel)
    w1_ref : (768, 512) bf16   Linear1 weight with BN1 scale folded in
    c1_ref : (1, 512)   f32    Linear1 bias folded with BN1 shift
    w2_ref : (512, 512) bf16   Linear2 weight with BN2 scale folded in
    c2_ref : (1, 512)   f32    Linear2 bias folded with BN2 shift
    w3_ref : (1, 512)   f32    output head weight as a row vector
    b3_ref : (1, 1)     f32    output head bias
    o_ref  : (TM, 1)    f32    logits
    """
    # bf16 cast happens here (free VPU filler under the MXU), not in a separate
    # XLA pass over HBM.
    x = x_ref[...].astype(jnp.bfloat16)

    # Layer 1: Linear (+ folded BatchNorm) + ReLU.  bf16 operands, f32 MXU acc.
    h = jnp.dot(x, w1_ref[...], preferred_element_type=jnp.float32)
    h = jnp.maximum(h + c1_ref[...], 0.0)
    # Dropout(0.3): identity in eval mode.

    # Layer 2: Linear (+ folded BatchNorm) + ReLU.  Cast the activation to bf16
    # only at the matmul operand; the epilogue stays in f32.
    h = jnp.dot(h.astype(jnp.bfloat16), w2_ref[...],
                preferred_element_type=jnp.float32)
    h = jnp.maximum(h + c2_ref[...], 0.0)
    # Dropout(0.3): identity in eval mode.

    # Output head (N=1): keep it off the MXU -- VPU multiply + lane reduction.
    out = jnp.sum(h * w3_ref[...], axis=-1, keepdims=True)          # (TM, 1)
    o_ref[...] = out + b3_ref[...]


def fold_params(params):
    """Fold eval-mode BatchNorm scale/shift into the Linear weights/biases and
    cast the big matmul operands to bf16."""
    (w1t, b1, s1, t1, w2t, b2, s2, t2, w3t, b3) = params
    w1f = (w1t * s1).astype(jnp.bfloat16)                 # (768, 512)
    c1 = (b1 * s1 + t1).astype(jnp.float32)               # (1, 512)
    w2f = (w2t * s2).astype(jnp.bfloat16)                 # (512, 512)
    c2 = (b2 * s2 + t2).astype(jnp.float32)               # (1, 512)
    w3row = w3t.reshape(1, HIDDEN).astype(jnp.float32)    # (1, 512)
    b3r = b3.reshape(1, 1).astype(jnp.float32)            # (1, 1)
    return w1f, c1, w2f, c2, w3row, b3r


def chessbot_forward(x, params, *, block_m=1024):
    """x: (B, 12, 8, 8) float32.  Returns logits (B, 1) float32.

    block_m=1024 fits the 32 MiB scoped-VMEM budget on all of v5e/v6e/v7x
    (live footprint ~14 MiB: 2x3 MiB f32 activation tile + ~2.6 MiB weights +
    intermediates).  On v6e/v7x it can be raised to 2048 together with
    vmem_limit_bytes.
    """
    B = x.shape[0]
    x2d = x.reshape(B, IN_FEATURES)          # torch.nn.Flatten (row-major) glue

    w1f, c1, w2f, c2, w3row, b3r = fold_params(params)

    # Pad rows only up to the next sublane multiple (8); never to a multiple of
    # the tile size (that would materialize a full padded copy of x in HBM).
    b8 = ((B + 7) // 8) * 8
    if b8 != B:
        x2d = jnp.pad(x2d, ((0, b8 - B), (0, 0)))

    # Tile size: multiple of 8, at most block_m, and small enough that the grid
    # has >= 2 steps whenever B > 8 so both v7x TensorCores get work.
    block_m = max(8, (int(block_m) // 8) * 8)
    half = ((pl.cdiv(b8, 2) + 7) // 8) * 8
    tm = min(block_m, half)
    grid_m = pl.cdiv(b8, tm)                 # partial last block handled by Pallas

    rows_processed = grid_m * tm
    flops = 2 * rows_processed * (IN_FEATURES * HIDDEN + HIDDEN * HIDDEN + HIDDEN)
    bytes_accessed = (x2d.size * 4                       # f32 activations
                      + w1f.size * 2 + w2f.size * 2      # bf16 weights
                      + (c1.size + c2.size + w3row.size + b3r.size) * 4
                      + b8 * OUT_FEATURES * 4)           # f32 output

    out = pl.pallas_call(
        _chessbot_kernel,
        out_shape=jax.ShapeDtypeStruct((b8, OUT_FEATURES), jnp.float32),
        grid=(grid_m,),
        in_specs=[
            # Activation tile: pipelined along the batch grid axis.
            pl.BlockSpec((tm, IN_FEATURES), lambda i: (i, 0)),
            # Weights / biases: constant block index -> stay resident in VMEM.
            pl.BlockSpec((IN_FEATURES, HIDDEN), lambda i: (0, 0)),
            pl.BlockSpec((1, HIDDEN), lambda i: (0, 0)),
            pl.BlockSpec((HIDDEN, HIDDEN), lambda i: (0, 0)),
            pl.BlockSpec((1, HIDDEN), lambda i: (0, 0)),
            pl.BlockSpec((1, HIDDEN), lambda i: (0, 0)),
            pl.BlockSpec((1, 1), lambda i: (0, 0)),
        ],
        out_specs=pl.BlockSpec((tm, OUT_FEATURES), lambda i: (i, 0)),
        compiler_params=pltpu.CompilerParams(
            dimension_semantics=("parallel",),
            # Explicit limit: raises v5e's 16 MiB scoped default, matches the
            # v6e/v7x 32 MiB default, stays under v7x's 64 MiB physical VMEM.
            vmem_limit_bytes=32 * 1024 * 1024),
        cost_estimate=pl.CostEstimate(
            flops=flops, transcendentals=0, bytes_accessed=bytes_accessed),
    )(x2d, w1f, c1, w2f, c2, w3row, b3r)

    return out[:B]


def init_params(key):
    """Deterministic parameter init matching the PyTorch module's shapes.

    Linear layers use PyTorch's default U(-1/sqrt(fan_in), 1/sqrt(fan_in)).
    BatchNorm1d running stats / affine params are given small random values
    (instead of the degenerate 1/0 defaults) and expressed as scale/shift:
        y = (x - mean) / sqrt(var + eps) * gamma + beta = x * s + t
    """
    ks = jax.random.split(key, 12)

    def linear(kw, kb, fan_in, fan_out):
        bound = 1.0 / jnp.sqrt(jnp.float32(fan_in))
        w = jax.random.uniform(kw, (fan_out, fan_in), jnp.float32, -bound, bound)
        b = jax.random.uniform(kb, (fan_out,), jnp.float32, -bound, bound)
        return w.T, b.reshape(1, fan_out)          # pre-transposed to (in, out)

    def bn_fold(kg, kb, km, kv, n):
        gamma = 1.0 + 0.1 * jax.random.normal(kg, (n,), jnp.float32)
        beta = 0.1 * jax.random.normal(kb, (n,), jnp.float32)
        mean = 0.1 * jax.random.normal(km, (n,), jnp.float32)
        var = jnp.abs(1.0 + 0.1 * jax.random.normal(kv, (n,), jnp.float32))
        inv_std = 1.0 / jnp.sqrt(var + BN_EPS)
        scale = gamma * inv_std
        shift = beta - mean * scale
        return scale.reshape(1, n), shift.reshape(1, n)

    w1t, b1 = linear(ks[0], ks[1], IN_FEATURES, HIDDEN)
    s1, t1 = bn_fold(ks[2], ks[3], ks[4], ks[5], HIDDEN)
    w2t, b2 = linear(ks[6], ks[7], HIDDEN, HIDDEN)
    s2, t2 = bn_fold(ks[8], ks[9], ks[10], ks[11], HIDDEN)
    kw3, kb3 = jax.random.split(jax.random.fold_in(key, 99))
    w3t, b3 = linear(kw3, kb3, HIDDEN, OUT_FEATURES)
    return (w1t, b1, s1, t1, w2t, b2, s2, t2, w3t, b3)


def reference_forward(x, params):
    """Pure-JAX reference replicating the kernel numerics (bf16 operands,
    f32 accumulation) for correctness checking."""
    w1f, c1, w2f, c2, w3row, b3r = fold_params(params)
    h = x.reshape(x.shape[0], IN_FEATURES).astype(jnp.bfloat16)
    h = jnp.maximum(
        jnp.dot(h, w1f, preferred_element_type=jnp.float32) + c1, 0.0)
    h = jnp.maximum(
        jnp.dot(h.astype(jnp.bfloat16), w2f,
                preferred_element_type=jnp.float32) + c2, 0.0)
    return jnp.sum(h * w3row, axis=-1, keepdims=True) + b3r


if __name__ == "__main__":
    key = jax.random.PRNGKey(0)
    kx, kp = jax.random.split(key)
    params = init_params(kp)

    # Small case (single tile, evenly divided).
    B = 4
    x = jax.random.normal(kx, (B, 12, 8, 8), jnp.float32)   # chess board planes
    logits = jax.block_until_ready(chessbot_forward(x, params))
    ref = reference_forward(x, params)
    assert logits.shape == (B, 1), logits.shape
    assert jnp.allclose(logits, ref, atol=1e-2, rtol=1e-2), (
        f"mismatch: {logits} vs {ref}")

    # Second case exercising the >=2-step grid and partial-last-block path.
    B2 = 20
    x2 = jax.random.normal(jax.random.fold_in(kx, 1), (B2, 12, 8, 8),
                           jnp.float32)
    logits2 = jax.block_until_ready(chessbot_forward(x2, params))
    ref2 = reference_forward(x2, params)
    assert logits2.shape == (B2, 1), logits2.shape
    assert jnp.allclose(logits2, ref2, atol=1e-2, rtol=1e-2), "mismatch (B=20)"

    print("KERNEL_OK")
</pallas_src>

<mosaic_0001>
module attributes {stable_mosaic.version = 11 : i64} {
  func.func @_chessbot_kernel(%arg0: i32, %arg1: memref<8x768xf32, #tpu.memory_space<vmem>>, %arg2: memref<768x512xbf16, #tpu.memory_space<vmem>>, %arg3: memref<1x512xf32, #tpu.memory_space<vmem>>, %arg4: memref<512x512xbf16, #tpu.memory_space<vmem>>, %arg5: memref<1x512xf32, #tpu.memory_space<vmem>>, %arg6: memref<1x512xf32, #tpu.memory_space<vmem>>, %arg7: memref<1x1xf32, #tpu.memory_space<vmem>>, %arg8: memref<8x1xf32, #tpu.memory_space<vmem>>) attributes {dimension_semantics = [#tpu.dimension_semantics<parallel>], iteration_bounds = array<i64: 1>, scalar_prefetch = 0 : i64, scratch_operands = 0 : i64, tpu.core_type = #tpu.core_type<tc>, window_params = [{transform_indices = @transform_0, window_bounds = array<i64: 8, 768>}, {pipeline_mode = #tpu.pipeline_mode<synchronous>, transform_indices = @transform_1, window_bounds = array<i64: 768, 512>}, {pipeline_mode = #tpu.pipeline_mode<synchronous>, transform_indices = @transform_2, window_bounds = array<i64: 1, 512>}, {pipeline_mode = #tpu.pipeline_mode<synchronous>, transform_indices = @transform_3, window_bounds = array<i64: 512, 512>}, {pipeline_mode = #tpu.pipeline_mode<synchronous>, transform_indices = @transform_4, window_bounds = array<i64: 1, 512>}, {pipeline_mode = #tpu.pipeline_mode<synchronous>, transform_indices = @transform_5, window_bounds = array<i64: 1, 512>}, {pipeline_mode = #tpu.pipeline_mode<synchronous>, transform_indices = @transform_6, window_bounds = array<i64: 1, 1>}, {transform_indices = @transform_7, window_bounds = array<i64: 8, 1>}]} {
    %c0 = arith.constant 0 : index
    %c0_0 = arith.constant 0 : index
    %0 = vector.load %arg1[%c0, %c0_0] : memref<8x768xf32, #tpu.memory_space<vmem>>, vector<8x768xf32>
    %1 = arith.truncf %0 : vector<8x768xf32> to vector<8x768xbf16>
    %c0_1 = arith.constant 0 : index
    %c0_2 = arith.constant 0 : index
    %2 = vector.load %arg2[%c0_1, %c0_2] : memref<768x512xbf16, #tpu.memory_space<vmem>>, vector<768x512xbf16>
    %cst = arith.constant dense<0.000000e+00> : vector<8x512xf32>
    %3 = tpu.matmul %1, %2, %cst {dimension_numbers = #tpu.dot_dimension_numbers<[1], [0], [0], [1], [0, 0, 1, 1], [], []>} : vector<8x768xbf16>, vector<768x512xbf16>, vector<8x512xf32> -> vector<8x512xf32>
    %c0_3 = arith.constant 0 : index
    %c0_4 = arith.constant 0 : index
    %4 = vector.load %arg3[%c0_3, %c0_4] : memref<1x512xf32, #tpu.memory_space<vmem>>, vector<1x512xf32>
    %5 = vector.broadcast %4 : vector<1x512xf32> to vector<8x512xf32>
    %6 = arith.addf %3, %5 : vector<8x512xf32>
    %cst_5 = arith.constant 0.000000e+00 : f32
    %7 = vector.broadcast %cst_5 : f32 to vector<8x512xf32>
    %8 = arith.maximumf %6, %7 : vector<8x512xf32>
    %9 = arith.truncf %8 : vector<8x512xf32> to vector<8x512xbf16>
    %c0_6 = arith.constant 0 : index
    %c0_7 = arith.constant 0 : index
    %10 = vector.load %arg4[%c0_6, %c0_7] : memref<512x512xbf16, #tpu.memory_space<vmem>>, vector<512x512xbf16>
    %cst_8 = arith.constant dense<0.000000e+00> : vector<8x512xf32>
    %11 = tpu.matmul %9, %10, %cst_8 {dimension_numbers = #tpu.dot_dimension_numbers<[1], [0], [0], [1], [0, 0, 1, 1], [], []>} : vector<8x512xbf16>, vector<512x512xbf16>, vector<8x512xf32> -> vector<8x512xf32>
    %c0_9 = arith.constant 0 : index
    %c0_10 = arith.constant 0 : index
    %12 = vector.load %arg5[%c0_9, %c0_10] : memref<1x512xf32, #tpu.memory_space<vmem>>, vector<1x512xf32>
    %13 = vector.broadcast %12 : vector<1x512xf32> to vector<8x512xf32>
    %14 = arith.addf %11, %13 : vector<8x512xf32>
    %cst_11 = arith.constant 0.000000e+00 : f32
    %15 = vector.broadcast %cst_11 : f32 to vector<8x512xf32>
    %16 = arith.maximumf %14, %15 : vector<8x512xf32>
    %c0_12 = arith.constant 0 : index
    %c0_13 = arith.constant 0 : index
    %17 = vector.load %arg6[%c0_12, %c0_13] : memref<1x512xf32, #tpu.memory_space<vmem>>, vector<1x512xf32>
    %18 = vector.broadcast %17 : vector<1x512xf32> to vector<8x512xf32>
    %19 = arith.mulf %16, %18 : vector<8x512xf32>
    %cst_14 = arith.constant dense<0.000000e+00> : vector<8xf32>
    %20 = vector.multi_reduction <add>, %19, %cst_14 [1] : vector<8x512xf32> to vector<8xf32>
    %21 = vector.shape_cast %20 : vector<8xf32> to vector<8x1xf32>
    %c0_15 = arith.constant 0 : index
    %c0_16 = arith.constant 0 : index
    %22 = vector.load %arg7[%c0_15, %c0_16] : memref<1x1xf32, #tpu.memory_space<vmem>>, vector<1x1xf32>
    %23 = vector.broadcast %22 : vector<1x1xf32> to vector<8x1xf32>
    %24 = arith.addf %21, %23 : vector<8x1xf32>
    %c0_17 = arith.constant 0 : index
    %c0_18 = arith.constant 0 : index
    %25 = vector.load %arg8[%c0_17, %c0_18] : memref<8x1xf32, #tpu.memory_space<vmem>>, vector<8x1xf32>
    tpu.vector_store %arg8[%c0_17, %c0_18], %24 {strides = array<i32>} : memref<8x1xf32, #tpu.memory_space<vmem>>, vector<8x1xf32>,
    return
  }
  func.func @transform_0(%arg0: i32) -> (i32, i32) {
    %c0_i32 = arith.constant 0 : i32
    %c0_i32_0 = arith.constant 0 : i32
    return %arg0, %c0_i32 : i32, i32
  }
  func.func @transform_1(%arg0: i32) -> (i32, i32) {
    %c0_i32 = arith.constant 0 : i32
    %c0_i32_0 = arith.constant 0 : i32
    %c0_i32_1 = arith.constant 0 : i32
    return %c0_i32, %c0_i32_0 : i32, i32
  }
  func.func @transform_2(%arg0: i32) -> (i32, i32) {
    %c0_i32 = arith.constant 0 : i32
    %c0_i32_0 = arith.constant 0 : i32
    %c0_i32_1 = arith.constant 0 : i32
    return %c0_i32, %c0_i32_0 : i32, i32
  }
  func.func @transform_3(%arg0: i32) -> (i32, i32) {
    %c0_i32 = arith.constant 0 : i32
    %c0_i32_0 = arith.constant 0 : i32
    %c0_i32_1 = arith.constant 0 : i32
    return %c0_i32, %c0_i32_0 : i32, i32
  }
  func.func @transform_4(%arg0: i32) -> (i32, i32) {
    %c0_i32 = arith.constant 0 : i32
    %c0_i32_0 = arith.constant 0 : i32
    %c0_i32_1 = arith.constant 0 : i32
    return %c0_i32, %c0_i32_0 : i32, i32
  }
  func.func @transform_5(%arg0: i32) -> (i32, i32) {
    %c0_i32 = arith.constant 0 : i32
    %c0_i32_0 = arith.constant 0 : i32
    %c0_i32_1 = arith.constant 0 : i32
    return %c0_i32, %c0_i32_0 : i32, i32
  }
  func.func @transform_6(%arg0: i32) -> (i32, i32) {
    %c0_i32 = arith.constant 0 : i32
    %c0_i32_0 = arith.constant 0 : i32
    %c0_i32_1 = arith.constant 0 : i32
    return %c0_i32, %c0_i32_0 : i32, i32
  }
  func.func @transform_7(%arg0: i32) -> (i32, i32) {
    %c0_i32 = arith.constant 0 : i32
    %c0_i32_0 = arith.constant 0 : i32
    return %arg0, %c0_i32 : i32, i32
  }
}

</mosaic_0001>

<llo_original>
// kernel: tpu_custom_call.1
$region0: #{tpu_custom_call.1}
  #allocation0 [shape = 'u32[]', space=smem, size = 0x4, offset = 0x4, fixed_abs, tag = 'smem constant byte address 0x4 - core index']
  #allocation1 [shape = 'u32[144,128]{1,0:T(1,128)}', space=vmem, size = 0x12000, scoped, tag = 'internal scratch']
  #allocation2 [shape = 'f32[1,1]{1,0:T(1,128)S(1)}', space=vmem, size = 0x200, scoped, tag = 'scoped memory for tpu_custom_call.1']
  %s0 = inlined_call_operand.hbm [shape: f32[8,768], index: 0, kind: input, shape index: {}]
  %s1 = inlined_call_operand.hbm [shape: bf16[768,512], index: 1, kind: input, shape index: {}]
  %s2 = inlined_call_operand.vmem [shape: f32[1,512], index: 2, kind: input, shape index: {}]
  %s3 = inlined_call_operand.hbm [shape: bf16[512,512], index: 3, kind: input, shape index: {}]
  %s4 = inlined_call_operand.vmem [shape: f32[1,512], index: 4, kind: input, shape index: {}]
  %s5 = inlined_call_operand.hbm [shape: f32[1,512], index: 5, kind: input, shape index: {}]
  %s6 = inlined_call_operand.<no memory space> [shape: f32[1,1], index: 6, kind: input, shape index: {}]
  %s7 = inlined_call_operand.vmem [shape: f32[8,1], index: 7, kind: output, shape index: {}]
  %s8 = sld [smem:[#allocation0]]
  $region54: #{tpu_custom_call.1} parent=0
    _
  %s10 = ssub.s32 1, %s8
  %s11 = scalar_select 0, %s10, %s8
  %v12 = vstv %s6
  %13 = vst [vmem:[#allocation2] sm:$0x1] %v12
  $region1: #{tpu_custom_call.1} parent=0
    #allocation3 [shape = 'u8[24576]{0}', space=vmem, size = 0x6000, scoped, tag = 'input window, operand 0, single buffered']
    #allocation4 [shape = 's32[1]{0}', space=sflag, size = 0x4, scoped, tag = 'scoped memory for tpu_custom_call.1']
    #allocation5 [shape = 'u8[786432]{0}', space=vmem, size = 0xc0000, scoped, tag = 'input window, operand 1, single buffered']
    #allocation6 [shape = 's32[1]{0}', space=sflag, size = 0x4, scoped, tag = 'scoped memory for tpu_custom_call.1']
    #allocation7 [shape = 'u8[524288]{0}', space=vmem, size = 0x80000, scoped, tag = 'input window, operand 3, single buffered']
    #allocation8 [shape = 'u8[2048]{0}', space=vmem, size = 0x800, scoped, tag = 'input window, operand 5, single buffered']
    #allocation9 [shape = 's32[1]{0}', space=sflag, size = 0x4, scoped, tag = 'scoped memory for tpu_custom_call.1']
    %14 = vsyncpa [#allocation4], 0
    %15 = vsyncpa [#allocation6], 0
    %16 = vsyncpa [#allocation9], 0
    // Predicated region
    $region2: #{tpu_custom_call.1} parent=1 // pred_check
      _
    $region3: #{tpu_custom_call.1} parent=1 // pred_check_branch
      %18 = sbr.rel (0) target = $region5
    $region4: #{tpu_custom_call.1} parent=1 // pred_region
      %s20 = ssub.s32 768, 768
      %21 = vsyncadd [#allocation4], %s20
      %s23 = sshll.u32 [#allocation3], 4
      %s24 = int_to_ptr.vmem [resolvable:$true] %s23
      %26 = dma.hbm_to_vmem [thread:$0]  %s0, 768, %s24, [#allocation4]
    $region5: #{tpu_custom_call.1} parent=1 // pred_fallthru
      _
    // Predicated region
    $region6: #{tpu_custom_call.1} parent=1 // pred_check
      _
    $region7: #{tpu_custom_call.1} parent=1 // pred_check_branch
      %28 = sbr.rel (0) target = $region9
    $region8: #{tpu_custom_call.1} parent=1 // pred_region
      %s30 = ssub.s32 24576, 24576
      %31 = vsyncadd [#allocation6], %s30
      %s32 = sshll.u32 [#allocation5], 4
      %s33 = int_to_ptr.vmem [resolvable:$true] %s32
      %38 = dma.hbm_to_vmem [thread:$0]  %s1, 24576, %s33, [#allocation6], 256, 256, 16
    $region9: #{tpu_custom_call.1} parent=1 // pred_fallthru
      _
    // Predicated region
    $region10: #{tpu_custom_call.1} parent=1 // pred_check
      _
    $region11: #{tpu_custom_call.1} parent=1 // pred_check_branch
      %40 = sbr.rel (0) target = $region13
    $region12: #{tpu_custom_call.1} parent=1 // pred_region
      _
    $region13: #{tpu_custom_call.1} parent=1 // pred_fallthru
      _
    // Predicated region
    $region14: #{tpu_custom_call.1} parent=1 // pred_check
      _
    $region15: #{tpu_custom_call.1} parent=1 // pred_check_branch
      %42 = sbr.rel (0) target = $region17
    $region16: #{tpu_custom_call.1} parent=1 // pred_region
      %s44 = ssub.s32 16384, 16384
      %45 = vsyncadd [#allocation6], %s44
      %s46 = sshll.u32 [#allocation7], 4
      %s47 = int_to_ptr.vmem [resolvable:$true] %s46
      %52 = dma.hbm_to_vmem [thread:$0]  %s3, 16384, %s47, [#allocation6], 256, 256, 16
    $region17: #{tpu_custom_call.1} parent=1 // pred_fallthru
      _
    // Predicated region
    $region18: #{tpu_custom_call.1} parent=1 // pred_check
      _
    $region19: #{tpu_custom_call.1} parent=1 // pred_check_branch
      %54 = sbr.rel (0) target = $region21
    $region20: #{tpu_custom_call.1} parent=1 // pred_region
      _
    $region21: #{tpu_custom_call.1} parent=1 // pred_fallthru
      _
    // Predicated region
    $region22: #{tpu_custom_call.1} parent=1 // pred_check
      _
    $region23: #{tpu_custom_call.1} parent=1 // pred_check_branch
      %56 = sbr.rel (0) target = $region25
    $region24: #{tpu_custom_call.1} parent=1 // pred_region
      %s58 = ssub.s32 64, 64
      %59 = vsyncadd [#allocation9], %s58
      %s61 = sshll.u32 [#allocation8], 4
      %s62 = int_to_ptr.vmem [resolvable:$true] %s61
      %64 = dma.hbm_to_vmem [thread:$0]  %s5, 64, %s62, [#allocation9]
    $region25: #{tpu_custom_call.1} parent=1 // pred_fallthru
      _
    // Predicated region
    $region26: #{tpu_custom_call.1} parent=1 // pred_check
      _
    $region27: #{tpu_custom_call.1} parent=1 // pred_check_branch
      %66 = sbr.rel (0) target = $region29
    $region28: #{tpu_custom_call.1} parent=1 // pred_region
      _
    $region29: #{tpu_custom_call.1} parent=1 // pred_fallthru
      _
    // Predicated region
    $region30: #{tpu_custom_call.1} parent=1 // pred_check
      _
    $region31: #{tpu_custom_call.1} parent=1 // pred_check_branch
      %68 = sbr.rel (0) target = $region33
    $region32: #{tpu_custom_call.1} parent=1 // pred_region
      %69 = dma.done [#allocation4], 768
    $region33: #{tpu_custom_call.1} parent=1 // pred_fallthru
      _
    // Predicated region
    $region34: #{tpu_custom_call.1} parent=1 // pred_check
      _
    $region35: #{tpu_custom_call.1} parent=1 // pred_check_branch
      %71 = sbr.rel (0) target = $region37
    $region36: #{tpu_custom_call.1} parent=1 // pred_region
      %72 = dma.done [#allocation6], 24576
    $region37: #{tpu_custom_call.1} parent=1 // pred_fallthru
      _
    // Predicated region
    $region38: #{tpu_custom_call.1} parent=1 // pred_check
      _
    $region39: #{tpu_custom_call.1} parent=1 // pred_check_branch
      %74 = sbr.rel (0) target = $region41
    $region40: #{tpu_custom_call.1} parent=1 // pred_region
      %75 = dma.done [#allocation6], 16384
    $region41: #{tpu_custom_call.1} parent=1 // pred_fallthru
      _
    // Predicated region
    $region42: #{tpu_custom_call.1} parent=1 // pred_check
      _
    $region43: #{tpu_custom_call.1} parent=1 // pred_check_branch
      %77 = sbr.rel (0) target = $region45
    $region44: #{tpu_custom_call.1} parent=1 // pred_region
      %78 = dma.done [#allocation9], 64
    $region45: #{tpu_custom_call.1} parent=1 // pred_fallthru
      _
    %v79 = vld [vmem:[#allocation3] sm:$0xff]
    %v80 = vld [vmem:[#allocation3 + $0x8] sm:$0xff]
    %v81 = vld [vmem:[#allocation3 + $0x10] sm:$0xff]
    %v82 = vld [vmem:[#allocation3 + $0x18] sm:$0xff]
    %v83 = vld [vmem:[#allocation3 + $0x20] sm:$0xff]
    %v84 = vld [vmem:[#allocation3 + $0x28] sm:$0xff]
    %v85 = vpack.c.bf16 %v79, %v79
    %v86 = vpack.c.bf16 %v80, %v80
    %v87 = vpack.c.bf16 %v81, %v81
    %v88 = vpack.c.bf16 %v82, %v82
    %v89 = vpack.c.bf16 %v83, %v83
    %v90 = vpack.c.bf16 %v84, %v84
    %v91 = vld [vmem:[#allocation5] sm:$0xff]
    %v92 = vld [vmem:[#allocation5 + $0x8] sm:$0xff]
    %v93 = vld [vmem:[#allocation5 + $0x10] sm:$0xff]
    %v94 = vld [vmem:[#allocation5 + $0x18] sm:$0xff]
    %v95 = vld [vmem:[#allocation5 + $0x20] sm:$0xff]
    %v96 = vld [vmem:[#allocation5 + $0x28] sm:$0xff]
    %v97 = vld [vmem:[#allocation5 + $0x30] sm:$0xff]
    %v98 = vld [vmem:[#allocation5 + $0x38] sm:$0xff]
    %v99 = vld [vmem:[#allocation5 + $0x40] sm:$0xff]
    %v100 = vld [vmem:[#allocation5 + $0x48] sm:$0xff]
    %v101 = vld [vmem:[#allocation5 + $0x50] sm:$0xff]
    %v102 = vld [vmem:[#allocation5 + $0x58] sm:$0xff]
    %v103 = vld [vmem:[#allocation5 + $0x60] sm:$0xff]
    %v104 = vld [vmem:[#allocation5 + $0x68] sm:$0xff]
    %v105 = vld [vmem:[#allocation5 + $0x70] sm:$0xff]
    %v106 = vld [vmem:[#allocation5 + $0x78] sm:$0xff]
    %v107 = vld [vmem:[#allocation5 + $0x80] sm:$0xff]
    %v108 = vld [vmem:[#allocation5 + $0x88] sm:$0xff]
    %v109 = vld [vmem:[#allocation5 + $0x90] sm:$0xff]
    %v110 = vld [vmem:[#allocation5 + $0x98] sm:$0xff]
    %v111 = vld [vmem:[#allocation5 + $0xa0] sm:$0xff]
    %v112 = vld [vmem:[#allocation5 + $0xa8] sm:$0xff]
    %v113 = vld [vmem:[#allocation5 + $0xb0] sm:$0xff]
    %v114 = vld [vmem:[#allocation5 + $0xb8] sm:$0xff]
    %v115 = vld [vmem:[#allocation5 + $0xc0] sm:$0xff]
    %v116 = vld [vmem:[#allocation5 + $0xc8] sm:$0xff]
    %v117 = vld [vmem:[#allocation5 + $0xd0] sm:$0xff]
    %v118 = vld [vmem:[#allocation5 + $0xd8] sm:$0xff]
    %v119 = vld [vmem:[#allocation5 + $0xe0] sm:$0xff]
    %v120 = vld [vmem:[#allocation5 + $0xe8] sm:$0xff]
    %v121 = vld [vmem:[#allocation5 + $0xf0] sm:$0xff]
    %v122 = vld [vmem:[#allocation5 + $0xf8] sm:$0xff]
    %v123 = vld [vmem:[#allocation5 + $0x100] sm:$0xff]
    %v124 = vld [vmem:[#allocation5 + $0x108] sm:$0xff]
    %v125 = vld [vmem:[#allocation5 + $0x110] sm:$0xff]
    %v126 = vld [vmem:[#allocation5 + $0x118] sm:$0xff]
    %v127 = vld [vmem:[#allocation5 + $0x120] sm:$0xff]
    %v128 = vld [vmem:[#allocation5 + $0x128] sm:$0xff]
    %v129 = vld [vmem:[#allocation5 + $0x130] sm:$0xff]
    %v130 = vld [vmem:[#allocation5 + $0x138] sm:$0xff]
    %v131 = vld [vmem:[#allocation5 + $0x140] sm:$0xff]
    %v132 = vld [vmem:[#allocation5 + $0x148] sm:$0xff]
    %v133 = vld [vmem:[#allocation5 + $0x150] sm:$0xff]
    %v134 = vld [vmem:[#allocation5 + $0x158] sm:$0xff]
    %v135 = vld [vmem:[#allocation5 + $0x160] sm:$0xff]
    %v136 = vld [vmem:[#allocation5 + $0x168] sm:$0xff]
    %v137 = vld [vmem:[#allocation5 + $0x170] sm:$0xff]
    %v138 = vld [vmem:[#allocation5 + $0x178] sm:$0xff]
    %v139 = vld [vmem:[#allocation5 + $0x180] sm:$0xff]
    %v140 = vld [vmem:[#allocation5 + $0x188] sm:$0xff]
    %v141 = vld [vmem:[#allocation5 + $0x190] sm:$0xff]
    %v142 = vld [vmem:[#allocation5 + $0x198] sm:$0xff]
    %v143 = vld [vmem:[#allocation5 + $0x1a0] sm:$0xff]
    %v144 = vld [vmem:[#allocation5 + $0x1a8] sm:$0xff]
    %v145 = vld [vmem:[#allocation5 + $0x1b0] sm:$0xff]
    %v146 = vld [vmem:[#allocation5 + $0x1b8] sm:$0xff]
    %v147 = vld [vmem:[#allocation5 + $0x1c0] sm:$0xff]
    %v148 = vld [vmem:[#allocation5 + $0x1c8] sm:$0xff]
    %v149 = vld [vmem:[#allocation5 + $0x1d0] sm:$0xff]
    %v150 = vld [vmem:[#allocation5 + $0x1d8] sm:$0xff]
    %v151 = vld [vmem:[#allocation5 + $0x1e0] sm:$0xff]
    %v152 = vld [vmem:[#allocation5 + $0x1e8] sm:$0xff]
    %v153 = vld [vmem:[#allocation5 + $0x1f0] sm:$0xff]
    %v154 = vld [vmem:[#allocation5 + $0x1f8] sm:$0xff]
    %v155 = vld [vmem:[#allocation5 + $0x200] sm:$0xff]
    %v156 = vld [vmem:[#allocation5 + $0x208] sm:$0xff]
    %v157 = vld [vmem:[#allocation5 + $0x210] sm:$0xff]
    %v158 = vld [vmem:[#allocation5 + $0x218] sm:$0xff]
    %v159 = vld [vmem:[#allocation5 + $0x220] sm:$0xff]
    %v160 = vld [vmem:[#allocation5 + $0x228] sm:$0xff]
    %v161 = vld [vmem:[#allocation5 + $0x230] sm:$0xff]
    %v162 = vld [vmem:[#allocation5 + $0x238] sm:$0xff]
    %v163 = vld [vmem:[#allocation5 + $0x240] sm:$0xff]
    %v164 = vld [vmem:[#allocation5 + $0x248] sm:$0xff]
    %v165 = vld [vmem:[#allocation5 + $0x250] sm:$0xff]
    %v166 = vld [vmem:[#allocation5 + $0x258] sm:$0xff]
    %v167 = vld [vmem:[#allocation5 + $0x260] sm:$0xff]
    %v168 = vld [vmem:[#allocation5 + $0x268] sm:$0xff]
    %v169 = vld [vmem:[#allocation5 + $0x270] sm:$0xff]
    %v170 = vld [vmem:[#allocation5 + $0x278] sm:$0xff]
    %v171 = vld [vmem:[#allocation5 + $0x280] sm:$0xff]
    %v172 = vld [vmem:[#allocation5 + $0x288] sm:$0xff]
    %v173 = vld [vmem:[#allocation5 + $0x290] sm:$0xff]
    %v174 = vld [vmem:[#allocation5 + $0x298] sm:$0xff]
    %v175 = vld [vmem:[#allocation5 + $0x2a0] sm:$0xff]
    %v176 = vld [vmem:[#allocation5 + $0x2a8] sm:$0xff]
    %v177 = vld [vmem:[#allocation5 + $0x2b0] sm:$0xff]
    %v178 = vld [vmem:[#allocation5 + $0x2b8] sm:$0xff]
    %v179 = vld [vmem:[#allocation5 + $0x2c0] sm:$0xff]
    %v180 = vld [vmem:[#allocation5 + $0x2c8] sm:$0xff]
    %v181 = vld [vmem:[#allocation5 + $0x2d0] sm:$0xff]
    %v182 = vld [vmem:[#allocation5 + $0x2d8] sm:$0xff]
    %v183 = vld [vmem:[#allocation5 + $0x2e0] sm:$0xff]
    %v184 = vld [vmem:[#allocation5 + $0x2e8] sm:$0xff]
    %v185 = vld [vmem:[#allocation5 + $0x2f0] sm:$0xff]
    %v186 = vld [vmem:[#allocation5 + $0x2f8] sm:$0xff]
    %v187 = vld [vmem:[#allocation5 + $0x300] sm:$0xff]
    %v188 = vld [vmem:[#allocation5 + $0x308] sm:$0xff]
    %v189 = vld [vmem:[#allocation5 + $0x310] sm:$0xff]
    %v190 = vld [vmem:[#allocation5 + $0x318] sm:$0xff]
    %v191 = vld [vmem:[#allocation5 + $0x320] sm:$0xff]
    %v192 = vld [vmem:[#allocation5 + $0x328] sm:$0xff]
    %v193 = vld [vmem:[#allocation5 + $0x330] sm:$0xff]
    %v194 = vld [vmem:[#allocation5 + $0x338] sm:$0xff]
    %v195 = vld [vmem:[#allocation5 + $0x340] sm:$0xff]
    %v196 = vld [vmem:[#allocation5 + $0x348] sm:$0xff]
    %v197 = vld [vmem:[#allocation5 + $0x350] sm:$0xff]
    %v198 = vld [vmem:[#allocation5 + $0x358] sm:$0xff]
    %v199 = vld [vmem:[#allocation5 + $0x360] sm:$0xff]
    %v200 = vld [vmem:[#allocation5 + $0x368] sm:$0xff]
    %v201 = vld [vmem:[#allocation5 + $0x370] sm:$0xff]
    %v202 = vld [vmem:[#allocation5 + $0x378] sm:$0xff]
    %v203 = vld [vmem:[#allocation5 + $0x380] sm:$0xff]
    %v204 = vld [vmem:[#allocation5 + $0x388] sm:$0xff]
    %v205 = vld [vmem:[#allocation5 + $0x390] sm:$0xff]
    %v206 = vld [vmem:[#allocation5 + $0x398] sm:$0xff]
    %v207 = vld [vmem:[#allocation5 + $0x3a0] sm:$0xff]
    %v208 = vld [vmem:[#allocation5 + $0x3a8] sm:$0xff]
    %v209 = vld [vmem:[#allocation5 + $0x3b0] sm:$0xff]
    %v210 = vld [vmem:[#allocation5 + $0x3b8] sm:$0xff]
    %v211 = vld [vmem:[#allocation5 + $0x3c0] sm:$0xff]
    %v212 = vld [vmem:[#allocation5 + $0x3c8] sm:$0xff]
    %v213 = vld [vmem:[#allocation5 + $0x3d0] sm:$0xff]
    %v214 = vld [vmem:[#allocation5 + $0x3d8] sm:$0xff]
    %v215 = vld [vmem:[#allocation5 + $0x3e0] sm:$0xff]
    %v216 = vld [vmem:[#allocation5 + $0x3e8] sm:$0xff]
    %v217 = vld [vmem:[#allocation5 + $0x3f0] sm:$0xff]
    %v218 = vld [vmem:[#allocation5 + $0x3f8] sm:$0xff]
    %v219 = vld [vmem:[#allocation5 + $0x400] sm:$0xff]
    %v220 = vld [vmem:[#allocation5 + $0x408] sm:$0xff]
    %v221 = vld [vmem:[#allocation5 + $0x410] sm:$0xff]
    %v222 = vld [vmem:[#allocation5 + $0x418] sm:$0xff]
    %v223 = vld [vmem:[#allocation5 + $0x420] sm:$0xff]
    %v224 = vld [vmem:[#allocation5 + $0x428] sm:$0xff]
    %v225 = vld [vmem:[#allocation5 + $0x430] sm:$0xff]
    %v226 = vld [vmem:[#allocation5 + $0x438] sm:$0xff]
    %v227 = vld [vmem:[#allocation5 + $0x440] sm:$0xff]
    %v228 = vld [vmem:[#allocation5 + $0x448] sm:$0xff]
    %v229 = vld [vmem:[#allocation5 + $0x450] sm:$0xff]
    %v230 = vld [vmem:[#allocation5 + $0x458] sm:$0xff]
    %v231 = vld [vmem:[#allocation5 + $0x460] sm:$0xff]
    %v232 = vld [vmem:[#allocation5 + $0x468] sm:$0xff]
    %v233 = vld [vmem:[#allocation5 + $0x470] sm:$0xff]
    %v234 = vld [vmem:[#allocation5 + $0x478] sm:$0xff]
    %v235 = vld [vmem:[#allocation5 + $0x480] sm:$0xff]
    %v236 = vld [vmem:[#allocation5 + $0x488] sm:$0xff]
    %v237 = vld [vmem:[#allocation5 + $0x490] sm:$0xff]
    %v238 = vld [vmem:[#allocation5 + $0x498] sm:$0xff]
    %v239 = vld [vmem:[#allocation5 + $0x4a0] sm:$0xff]
    %v240 = vld [vmem:[#allocation5 + $0x4a8] sm:$0xff]
    %v241 = vld [vmem:[#allocation5 + $0x4b0] sm:$0xff]
    %v242 = vld [vmem:[#allocation5 + $0x4b8] sm:$0xff]
    %v243 = vld [vmem:[#allocation5 + $0x4c0] sm:$0xff]
    %v244 = vld [vmem:[#allocation5 + $0x4c8] sm:$0xff]
    %v245 = vld [vmem:[#allocation5 + $0x4d0] sm:$0xff]
    %v246 = vld [vmem:[#allocation5 + $0x4d8] sm:$0xff]
    %v247 = vld [vmem:[#allocation5 + $0x4e0] sm:$0xff]
    %v248 = vld [vmem:[#allocation5 + $0x4e8] sm:$0xff]
    %v249 = vld [vmem:[#allocation5 + $0x4f0] sm:$0xff]
    %v250 = vld [vmem:[#allocation5 + $0x4f8] sm:$0xff]
    %v251 = vld [vmem:[#allocation5 + $0x500] sm:$0xff]
    %v252 = vld [vmem:[#allocation5 + $0x508] sm:$0xff]
    %v253 = vld [vmem:[#allocation5 + $0x510] sm:$0xff]
    %v254 = vld [vmem:[#allocation5 + $0x518] sm:$0xff]
    %v255 = vld [vmem:[#allocation5 + $0x520] sm:$0xff]
    %v256 = vld [vmem:[#allocation5 + $0x528] sm:$0xff]
    %v257 = vld [vmem:[#allocation5 + $0x530] sm:$0xff]
    %v258 = vld [vmem:[#allocation5 + $0x538] sm:$0xff]
    %v259 = vld [vmem:[#allocation5 + $0x540] sm:$0xff]
    %v260 = vld [vmem:[#allocation5 + $0x548] sm:$0xff]
    %v261 = vld [vmem:[#allocation5 + $0x550] sm:$0xff]
    %v262 = vld [vmem:[#allocation5 + $0x558] sm:$0xff]
    %v263 = vld [vmem:[#allocation5 + $0x560] sm:$0xff]
    %v264 = vld [vmem:[#allocation5 + $0x568] sm:$0xff]
    %v265 = vld [vmem:[#allocation5 + $0x570] sm:$0xff]
    %v266 = vld [vmem:[#allocation5 + $0x578] sm:$0xff]
    %v267 = vld [vmem:[#allocation5 + $0x580] sm:$0xff]
    %v268 = vld [vmem:[#allocation5 + $0x588] sm:$0xff]
    %v269 = vld [vmem:[#allocation5 + $0x590] sm:$0xff]
    %v270 = vld [vmem:[#allocation5 + $0x598] sm:$0xff]
    %v271 = vld [vmem:[#allocation5 + $0x5a0] sm:$0xff]
    %v272 = vld [vmem:[#allocation5 + $0x5a8] sm:$0xff]
    %v273 = vld [vmem:[#allocation5 + $0x5b0] sm:$0xff]
    %v274 = vld [vmem:[#allocation5 + $0x5b8] sm:$0xff]
    %v275 = vld [vmem:[#allocation5 + $0x5c0] sm:$0xff]
    %v276 = vld [vmem:[#allocation5 + $0x5c8] sm:$0xff]
    %v277 = vld [vmem:[#allocation5 + $0x5d0] sm:$0xff]
    %v278 = vld [vmem:[#allocation5 + $0x5d8] sm:$0xff]
    %v279 = vld [vmem:[#allocation5 + $0x5e0] sm:$0xff]
    %v280 = vld [vmem:[#allocation5 + $0x5e8] sm:$0xff]
    %v281 = vld [vmem:[#allocation5 + $0x5f0] sm:$0xff]
    %v282 = vld [vmem:[#allocation5 + $0x5f8] sm:$0xff]
    %v283 = vld [vmem:[%s2] sm:$0xf]
    %v285 = vlaneseq
    %v286 = vshrl.u32 %v285, 7
    %v287 = vsub.s32 0, %v286
    %v288 = vrot.slane %v283, %v287
    %v289 = vlaneseq
    %v290 = vshrl.u32 %v289, 7
    %v291 = vsub.s32 1, %v290
    %v292 = vrot.slane %v283, %v291
    %v293 = vlaneseq
    %v294 = vshrl.u32 %v293, 7
    %v295 = vsub.s32 2, %v294
    %v296 = vrot.slane %v283, %v295
    %v297 = vlaneseq
    %v298 = vshrl.u32 %v297, 7
    %v299 = vsub.s32 3, %v298
    %v300 = vrot.slane %v283, %v299
    %v497 = vunpack.c.l.b16 %v91
    %v498 = vunpack.c.h.b16 %v91
    %v499 = vunpack.c.l.b16 %v92
    %v500 = vunpack.c.h.b16 %v92
    %v501 = vunpack.c.l.b16 %v93
    %v502 = vunpack.c.h.b16 %v93
    %v503 = vunpack.c.l.b16 %v94
    %v504 = vunpack.c.h.b16 %v94
    %v505 = vunpack.c.l.b16 %v95
    %v506 = vunpack.c.h.b16 %v95
    %v507 = vunpack.c.l.b16 %v96
    %v508 = vunpack.c.h.b16 %v96
    %v509 = vunpack.c.l.b16 %v97
    %v510 = vunpack.c.h.b16 %v97
    %v511 = vunpack.c.l.b16 %v98
    %v512 = vunpack.c.h.b16 %v98
    %v513 = vunpack.c.l.b16 %v99
    %v514 = vunpack.c.h.b16 %v99
    %v515 = vunpack.c.l.b16 %v100
    %v516 = vunpack.c.h.b16 %v100
    %v517 = vunpack.c.l.b16 %v101
    %v518 = vunpack.c.h.b16 %v101
    %v519 = vunpack.c.l.b16 %v102
    %v520 = vunpack.c.h.b16 %v102
    %v521 = vunpack.c.l.b16 %v103
    %v522 = vunpack.c.h.b16 %v103
    %v523 = vunpack.c.l.b16 %v104
    %v524 = vunpack.c.h.b16 %v104
    %v525 = vunpack.c.l.b16 %v105
    %v526 = vunpack.c.h.b16 %v105
    %v527 = vunpack.c.l.b16 %v106
    %v528 = vunpack.c.h.b16 %v106
    %v529 = vunpack.c.l.b16 %v107
    %v530 = vunpack.c.h.b16 %v107
    %v531 = vunpack.c.l.b16 %v108
    %v532 = vunpack.c.h.b16 %v108
    %v533 = vunpack.c.l.b16 %v109
    %v534 = vunpack.c.h.b16 %v109
    %v535 = vunpack.c.l.b16 %v110
    %v536 = vunpack.c.h.b16 %v110
    %v537 = vunpack.c.l.b16 %v111
    %v538 = vunpack.c.h.b16 %v111
    %v539 = vunpack.c.l.b16 %v112
    %v540 = vunpack.c.h.b16 %v112
    %v541 = vunpack.c.l.b16 %v113
    %v542 = vunpack.c.h.b16 %v113
    %v543 = vunpack.c.l.b16 %v114
    %v544 = vunpack.c.h.b16 %v114
    %v545 = vunpack.c.l.b16 %v115
    %v546 = vunpack.c.h.b16 %v115
    %v547 = vunpack.c.l.b16 %v116
    %v548 = vunpack.c.h.b16 %v116
    %v549 = vunpack.c.l.b16 %v117
    %v550 = vunpack.c.h.b16 %v117
    %v551 = vunpack.c.l.b16 %v118
    %v552 = vunpack.c.h.b16 %v118
    %v553 = vunpack.c.l.b16 %v119
    %v554 = vunpack.c.h.b16 %v119
    %v555 = vunpack.c.l.b16 %v120
    %v556 = vunpack.c.h.b16 %v120
    %v557 = vunpack.c.l.b16 %v121
    %v558 = vunpack.c.h.b16 %v121
    %v559 = vunpack.c.l.b16 %v122
    %v560 = vunpack.c.h.b16 %v122
    %v561 = vunpack.c.l.b16 %v123
    %v562 = vunpack.c.h.b16 %v123
    %v563 = vunpack.c.l.b16 %v124
    %v564 = vunpack.c.h.b16 %v124
    %v565 = vunpack.c.l.b16 %v125
    %v566 = vunpack.c.h.b16 %v125
    %v567 = vunpack.c.l.b16 %v126
    %v568 = vunpack.c.h.b16 %v126
    %v569 = vunpack.c.l.b16 %v127
    %v570 = vunpack.c.h.b16 %v127
    %v571 = vunpack.c.l.b16 %v128
    %v572 = vunpack.c.h.b16 %v128
    %v573 = vunpack.c.l.b16 %v129
    %v574 = vunpack.c.h.b16 %v129
    %v575 = vunpack.c.l.b16 %v130
    %v576 = vunpack.c.h.b16 %v130
    %v577 = vunpack.c.l.b16 %v131
    %v578 = vunpack.c.h.b16 %v131
    %v579 = vunpack.c.l.b16 %v132
    %v580 = vunpack.c.h.b16 %v132
    %v581 = vunpack.c.l.b16 %v133
    %v582 = vunpack.c.h.b16 %v133
    %v583 = vunpack.c.l.b16 %v134
    %v584 = vunpack.c.h.b16 %v134
    %v585 = vunpack.c.l.b16 %v135
    %v586 = vunpack.c.h.b16 %v135
    %v587 = vunpack.c.l.b16 %v136
    %v588 = vunpack.c.h.b16 %v136
    %v589 = vunpack.c.l.b16 %v137
    %v590 = vunpack.c.h.b16 %v137
    %v591 = vunpack.c.l.b16 %v138
    %v592 = vunpack.c.h.b16 %v138
    %v593 = vunpack.c.l.b16 %v139
    %v594 = vunpack.c.h.b16 %v139
    %v595 = vunpack.c.l.b16 %v140
    %v596 = vunpack.c.h.b16 %v140
    %v597 = vunpack.c.l.b16 %v141
    %v598 = vunpack.c.h.b16 %v141
    %v599 = vunpack.c.l.b16 %v142
    %v600 = vunpack.c.h.b16 %v142
    %v601 = vunpack.c.l.b16 %v143
    %v602 = vunpack.c.h.b16 %v143
    %v603 = vunpack.c.l.b16 %v144
    %v604 = vunpack.c.h.b16 %v144
    %v605 = vunpack.c.l.b16 %v145
    %v606 = vunpack.c.h.b16 %v145
    %v607 = vunpack.c.l.b16 %v146
    %v608 = vunpack.c.h.b16 %v146
    %v609 = vunpack.c.l.b16 %v147
    %v610 = vunpack.c.h.b16 %v147
    %v611 = vunpack.c.l.b16 %v148
    %v612 = vunpack.c.h.b16 %v148
    %v613 = vunpack.c.l.b16 %v149
    %v614 = vunpack.c.h.b16 %v149
    %v615 = vunpack.c.l.b16 %v150
    %v616 = vunpack.c.h.b16 %v150
    %v617 = vunpack.c.l.b16 %v151
    %v618 = vunpack.c.h.b16 %v151
    %v619 = vunpack.c.l.b16 %v152
    %v620 = vunpack.c.h.b16 %v152
    %v621 = vunpack.c.l.b16 %v153
    %v622 = vunpack.c.h.b16 %v153
    %v623 = vunpack.c.l.b16 %v154
    %v624 = vunpack.c.h.b16 %v154
    %v625 = vunpack.c.l.b16 %v155
    %v626 = vunpack.c.h.b16 %v155
    %v627 = vunpack.c.l.b16 %v156
    %v628 = vunpack.c.h.b16 %v156
    %v629 = vunpack.c.l.b16 %v157
    %v630 = vunpack.c.h.b16 %v157
    %v631 = vunpack.c.l.b16 %v158
    %v632 = vunpack.c.h.b16 %v158
    %v633 = vunpack.c.l.b16 %v159
    %v634 = vunpack.c.h.b16 %v159
    %v635 = vunpack.c.l.b16 %v160
    %v636 = vunpack.c.h.b16 %v160
    %v637 = vunpack.c.l.b16 %v161
    %v638 = vunpack.c.h.b16 %v161
    %v639 = vunpack.c.l.b16 %v162
    %v640 = vunpack.c.h.b16 %v162
    %v641 = vunpack.c.l.b16 %v163
    %v642 = vunpack.c.h.b16 %v163
    %v643 = vunpack.c.l.b16 %v164
    %v644 = vunpack.c.h.b16 %v164
    %v645 = vunpack.c.l.b16 %v165
    %v646 = vunpack.c.h.b16 %v165
    %v647 = vunpack.c.l.b16 %v166
    %v648 = vunpack.c.h.b16 %v166
    %v649 = vunpack.c.l.b16 %v167
    %v650 = vunpack.c.h.b16 %v167
    %v651 = vunpack.c.l.b16 %v168
    %v652 = vunpack.c.h.b16 %v168
    %v653 = vunpack.c.l.b16 %v169
    %v654 = vunpack.c.h.b16 %v169
    %v655 = vunpack.c.l.b16 %v170
    %v656 = vunpack.c.h.b16 %v170
    %v657 = vunpack.c.l.b16 %v171
    %v658 = vunpack.c.h.b16 %v171
    %v659 = vunpack.c.l.b16 %v172
    %v660 = vunpack.c.h.b16 %v172
    %v661 = vunpack.c.l.b16 %v173
    %v662 = vunpack.c.h.b16 %v173
    %v663 = vunpack.c.l.b16 %v174
    %v664 = vunpack.c.h.b16 %v174
    %v665 = vunpack.c.l.b16 %v175
    %v666 = vunpack.c.h.b16 %v175
    %v667 = vunpack.c.l.b16 %v176
    %v668 = vunpack.c.h.b16 %v176
    %v669 = vunpack.c.l.b16 %v177
    %v670 = vunpack.c.h.b16 %v177
    %v671 = vunpack.c.l.b16 %v178
    %v672 = vunpack.c.h.b16 %v178
    %v673 = vunpack.c.l.b16 %v179
    %v674 = vunpack.c.h.b16 %v179
    %v675 = vunpack.c.l.b16 %v180
    %v676 = vunpack.c.h.b16 %v180
    %v677 = vunpack.c.l.b16 %v181
    %v678 = vunpack.c.h.b16 %v181
    %v679 = vunpack.c.l.b16 %v182
    %v680 = vunpack.c.h.b16 %v182
    %v681 = vunpack.c.l.b16 %v183
    %v682 = vunpack.c.h.b16 %v183
    %v683 = vunpack.c.l.b16 %v184
    %v684 = vunpack.c.h.b16 %v184
    %v685 = vunpack.c.l.b16 %v185
    %v686 = vunpack.c.h.b16 %v185
    %v687 = vunpack.c.l.b16 %v186
    %v688 = vunpack.c.h.b16 %v186
    %v689 = vunpack.c.l.b16 %v187
    %v690 = vunpack.c.h.b16 %v187
    %v691 = vunpack.c.l.b16 %v188
    %v692 = vunpack.c.h.b16 %v188
    %v693 = vunpack.c.l.b16 %v189
    %v694 = vunpack.c.h.b16 %v189
    %v695 = vunpack.c.l.b16 %v190
    %v696 = vunpack.c.h.b16 %v190
    %v697 = vunpack.c.l.b16 %v191
    %v698 = vunpack.c.h.b16 %v191
    %v699 = vunpack.c.l.b16 %v192
    %v700 = vunpack.c.h.b16 %v192
    %v701 = vunpack.c.l.b16 %v193
    %v702 = vunpack.c.h.b16 %v193
    %v703 = vunpack.c.l.b16 %v194
    %v704 = vunpack.c.h.b16 %v194
    %v705 = vunpack.c.l.b16 %v195
    %v706 = vunpack.c.h.b16 %v195
    %v707 = vunpack.c.l.b16 %v196
    %v708 = vunpack.c.h.b16 %v196
    %v709 = vunpack.c.l.b16 %v197
    %v710 = vunpack.c.h.b16 %v197
    %v711 = vunpack.c.l.b16 %v198
    %v712 = vunpack.c.h.b16 %v198
    %v713 = vunpack.c.l.b16 %v199
    %v714 = vunpack.c.h.b16 %v199
    %v715 = vunpack.c.l.b16 %v200
    %v716 = vunpack.c.h.b16 %v200
    %v717 = vunpack.c.l.b16 %v201
    %v718 = vunpack.c.h.b16 %v201
    %v719 = vunpack.c.l.b16 %v202
    %v720 = vunpack.c.h.b16 %v202
    %v721 = vunpack.c.l.b16 %v203
    %v722 = vunpack.c.h.b16 %v203
    %v723 = vunpack.c.l.b16 %v204
    %v724 = vunpack.c.h.b16 %v204
    %v725 = vunpack.c.l.b16 %v205
    %v726 = vunpack.c.h.b16 %v205
    %v727 = vunpack.c.l.b16 %v206
    %v728 = vunpack.c.h.b16 %v206
    %v729 = vunpack.c.l.b16 %v207
    %v730 = vunpack.c.h.b16 %v207
    %v731 = vunpack.c.l.b16 %v208
    %v732 = vunpack.c.h.b16 %v208
    %v733 = vunpack.c.l.b16 %v209
    %v734 = vunpack.c.h.b16 %v209
    %v735 = vunpack.c.l.b16 %v210
    %v736 = vunpack.c.h.b16 %v210
    %v737 = vunpack.c.l.b16 %v211
    %v738 = vunpack.c.h.b16 %v211
    %v739 = vunpack.c.l.b16 %v212
    %v740 = vunpack.c.h.b16 %v212
    %v741 = vunpack.c.l.b16 %v213
    %v742 = vunpack.c.h.b16 %v213
    %v743 = vunpack.c.l.b16 %v214
    %v744 = vunpack.c.h.b16 %v214
    %v745 = vunpack.c.l.b16 %v215
    %v746 = vunpack.c.h.b16 %v215
    %v747 = vunpack.c.l.b16 %v216
    %v748 = vunpack.c.h.b16 %v216
    %v749 = vunpack.c.l.b16 %v217
    %v750 = vunpack.c.h.b16 %v217
    %v751 = vunpack.c.l.b16 %v218
    %v752 = vunpack.c.h.b16 %v218
    %v753 = vunpack.c.l.b16 %v219
    %v754 = vunpack.c.h.b16 %v219
    %v755 = vunpack.c.l.b16 %v220
    %v756 = vunpack.c.h.b16 %v220
    %v757 = vunpack.c.l.b16 %v221
    %v758 = vunpack.c.h.b16 %v221
    %v759 = vunpack.c.l.b16 %v222
    %v760 = vunpack.c.h.b16 %v222
    %v761 = vunpack.c.l.b16 %v223
    %v762 = vunpack.c.h.b16 %v223
    %v763 = vunpack.c.l.b16 %v224
    %v764 = vunpack.c.h.b16 %v224
    %v765 = vunpack.c.l.b16 %v225
    %v766 = vunpack.c.h.b16 %v225
    %v767 = vunpack.c.l.b16 %v226
    %v768 = vunpack.c.h.b16 %v226
    %v769 = vunpack.c.l.b16 %v227
    %v770 = vunpack.c.h.b16 %v227
    %v771 = vunpack.c.l.b16 %v228
    %v772 = vunpack.c.h.b16 %v228
    %v773 = vunpack.c.l.b16 %v229
    %v774 = vunpack.c.h.b16 %v229
    %v775 = vunpack.c.l.b16 %v230
    %v776 = vunpack.c.h.b16 %v230
    %v777 = vunpack.c.l.b16 %v231
    %v778 = vunpack.c.h.b16 %v231
    %v779 = vunpack.c.l.b16 %v232
    %v780 = vunpack.c.h.b16 %v232
    %v781 = vunpack.c.l.b16 %v233
    %v782 = vunpack.c.h.b16 %v233
    %v783 = vunpack.c.l.b16 %v234
    %v784 = vunpack.c.h.b16 %v234
    %v785 = vunpack.c.l.b16 %v235
    %v786 = vunpack.c.h.b16 %v235
    %v787 = vunpack.c.l.b16 %v236
    %v788 = vunpack.c.h.b16 %v236
    %v789 = vunpack.c.l.b16 %v237
    %v790 = vunpack.c.h.b16 %v237
    %v791 = vunpack.c.l.b16 %v238
    %v792 = vunpack.c.h.b16 %v238
    %v793 = vunpack.c.l.b16 %v239
    %v794 = vunpack.c.h.b16 %v239
    %v795 = vunpack.c.l.b16 %v240
    %v796 = vunpack.c.h.b16 %v240
    %v797 = vunpack.c.l.b16 %v241
    %v798 = vunpack.c.h.b16 %v241
    %v799 = vunpack.c.l.b16 %v242
    %v800 = vunpack.c.h.b16 %v242
    %v801 = vunpack.c.l.b16 %v243
    %v802 = vunpack.c.h.b16 %v243
    %v803 = vunpack.c.l.b16 %v244
    %v804 = vunpack.c.h.b16 %v244
    %v805 = vunpack.c.l.b16 %v245
    %v806 = vunpack.c.h.b16 %v245
    %v807 = vunpack.c.l.b16 %v246
    %v808 = vunpack.c.h.b16 %v246
    %v809 = vunpack.c.l.b16 %v247
    %v810 = vunpack.c.h.b16 %v247
    %v811 = vunpack.c.l.b16 %v248
    %v812 = vunpack.c.h.b16 %v248
    %v813 = vunpack.c.l.b16 %v249
    %v814 = vunpack.c.h.b16 %v249
    %v815 = vunpack.c.l.b16 %v250
    %v816 = vunpack.c.h.b16 %v250
    %v817 = vunpack.c.l.b16 %v251
    %v818 = vunpack.c.h.b16 %v251
    %v819 = vunpack.c.l.b16 %v252
    %v820 = vunpack.c.h.b16 %v252
    %v821 = vunpack.c.l.b16 %v253
    %v822 = vunpack.c.h.b16 %v253
    %v823 = vunpack.c.l.b16 %v254
    %v824 = vunpack.c.h.b16 %v254
    %v825 = vunpack.c.l.b16 %v255
    %v826 = vunpack.c.h.b16 %v255
    %v827 = vunpack.c.l.b16 %v256
    %v828 = vunpack.c.h.b16 %v256
    %v829 = vunpack.c.l.b16 %v257
    %v830 = vunpack.c.h.b16 %v257
    %v831 = vunpack.c.l.b16 %v258
    %v832 = vunpack.c.h.b16 %v258
    %v833 = vunpack.c.l.b16 %v259
    %v834 = vunpack.c.h.b16 %v259
    %v835 = vunpack.c.l.b16 %v260
    %v836 = vunpack.c.h.b16 %v260
    %v837 = vunpack.c.l.b16 %v261
    %v838 = vunpack.c.h.b16 %v261
    %v839 = vunpack.c.l.b16 %v262
    %v840 = vunpack.c.h.b16 %v262
    %v841 = vunpack.c.l.b16 %v263
    %v842 = vunpack.c.h.b16 %v263
    %v843 = vunpack.c.l.b16 %v264
    %v844 = vunpack.c.h.b16 %v264
    %v845 = vunpack.c.l.b16 %v265
    %v846 = vunpack.c.h.b16 %v265
    %v847 = vunpack.c.l.b16 %v266
    %v848 = vunpack.c.h.b16 %v266
    %v849 = vunpack.c.l.b16 %v267
    %v850 = vunpack.c.h.b16 %v267
    %v851 = vunpack.c.l.b16 %v268
    %v852 = vunpack.c.h.b16 %v268
    %v853 = vunpack.c.l.b16 %v269
    %v854 = vunpack.c.h.b16 %v269
    %v855 = vunpack.c.l.b16 %v270
    %v856 = vunpack.c.h.b16 %v270
    %v857 = vunpack.c.l.b16 %v271
    %v858 = vunpack.c.h.b16 %v271
    %v859 = vunpack.c.l.b16 %v272
    %v860 = vunpack.c.h.b16 %v272
    %v861 = vunpack.c.l.b16 %v273
    %v862 = vunpack.c.h.b16 %v273
    %v863 = vunpack.c.l.b16 %v274
    %v864 = vunpack.c.h.b16 %v274
    %v865 = vunpack.c.l.b16 %v275
    %v866 = vunpack.c.h.b16 %v275
    %v867 = vunpack.c.l.b16 %v276
    %v868 = vunpack.c.h.b16 %v276
    %v869 = vunpack.c.l.b16 %v277
    %v870 = vunpack.c.h.b16 %v277
    %v871 = vunpack.c.l.b16 %v278
    %v872 = vunpack.c.h.b16 %v278
    %v873 = vunpack.c.l.b16 %v279
    %v874 = vunpack.c.h.b16 %v279
    %v875 = vunpack.c.l.b16 %v280
    %v876 = vunpack.c.h.b16 %v280
    %v877 = vunpack.c.l.b16 %v281
    %v878 = vunpack.c.h.b16 %v281
    %v879 = vunpack.c.l.b16 %v282
    %v880 = vunpack.c.h.b16 %v282
    %v881 = vpack.c.b16 %v501, %v497
    %v882 = vpack.c.b16 %v502, %v498
    %v883 = vpack.c.b16 %v503, %v499
    %v884 = vpack.c.b16 %v504, %v500
    %v885 = vpack.c.b16 %v509, %v505
    %v886 = vpack.c.b16 %v510, %v506
    %v887 = vpack.c.b16 %v511, %v507
    %v888 = vpack.c.b16 %v512, %v508
    %v889 = vpack.c.b16 %v517, %v513
    %v890 = vpack.c.b16 %v518, %v514
    %v891 = vpack.c.b16 %v519, %v515
    %v892 = vpack.c.b16 %v520, %v516
    %v893 = vpack.c.b16 %v525, %v521
    %v894 = vpack.c.b16 %v526, %v522
    %v895 = vpack.c.b16 %v527, %v523
    %v896 = vpack.c.b16 %v528, %v524
    %v897 = vpack.c.b16 %v533, %v529
    %v898 = vpack.c.b16 %v534, %v530
    %v899 = vpack.c.b16 %v535, %v531
    %v900 = vpack.c.b16 %v536, %v532
    %v901 = vpack.c.b16 %v541, %v537
    %v902 = vpack.c.b16 %v542, %v538
    %v903 = vpack.c.b16 %v543, %v539
    %v904 = vpack.c.b16 %v544, %v540
    %v905 = vpack.c.b16 %v549, %v545
    %v906 = vpack.c.b16 %v550, %v546
    %v907 = vpack.c.b16 %v551, %v547
    %v908 = vpack.c.b16 %v552, %v548
    %v909 = vpack.c.b16 %v557, %v553
    %v910 = vpack.c.b16 %v558, %v554
    %v911 = vpack.c.b16 %v559, %v555
    %v912 = vpack.c.b16 %v560, %v556
    %v913 = vpack.c.b16 %v565, %v561
    %v914 = vpack.c.b16 %v566, %v562
    %v915 = vpack.c.b16 %v567, %v563
    %v916 = vpack.c.b16 %v568, %v564
    %v917 = vpack.c.b16 %v573, %v569
    %v918 = vpack.c.b16 %v574, %v570
    %v919 = vpack.c.b16 %v575, %v571
    %v920 = vpack.c.b16 %v576, %v572
    %v921 = vpack.c.b16 %v581, %v577
    %v922 = vpack.c.b16 %v582, %v578
    %v923 = vpack.c.b16 %v583, %v579
    %v924 = vpack.c.b16 %v584, %v580
    %v925 = vpack.c.b16 %v589, %v585
    %v926 = vpack.c.b16 %v590, %v586
    %v927 = vpack.c.b16 %v591, %v587
    %v928 = vpack.c.b16 %v592, %v588
    %v929 = vpack.c.b16 %v597, %v593
    %v930 = vpack.c.b16 %v598, %v594
    %v931 = vpack.c.b16 %v599, %v595
    %v932 = vpack.c.b16 %v600, %v596
    %v933 = vpack.c.b16 %v605, %v601
    %v934 = vpack.c.b16 %v606, %v602
    %v935 = vpack.c.b16 %v607, %v603
    %v936 = vpack.c.b16 %v608, %v604
    %v937 = vpack.c.b16 %v613, %v609
    %v938 = vpack.c.b16 %v614, %v610
    %v939 = vpack.c.b16 %v615, %v611
    %v940 = vpack.c.b16 %v616, %v612
    %v941 = vpack.c.b16 %v621, %v617
    %v942 = vpack.c.b16 %v622, %v618
    %v943 = vpack.c.b16 %v623, %v619
    %v944 = vpack.c.b16 %v624, %v620
    %v945 = vpack.c.b16 %v629, %v625
    %v946 = vpack.c.b16 %v630, %v626
    %v947 = vpack.c.b16 %v631, %v627
    %v948 = vpack.c.b16 %v632, %v628
    %v949 = vpack.c.b16 %v637, %v633
    %v950 = vpack.c.b16 %v638, %v634
    %v951 = vpack.c.b16 %v639, %v635
    %v952 = vpack.c.b16 %v640, %v636
    %v953 = vpack.c.b16 %v645, %v641
    %v954 = vpack.c.b16 %v646, %v642
    %v955 = vpack.c.b16 %v647, %v643
    %v956 = vpack.c.b16 %v648, %v644
    %v957 = vpack.c.b16 %v653, %v649
    %v958 = vpack.c.b16 %v654, %v650
    %v959 = vpack.c.b16 %v655, %v651
    %v960 = vpack.c.b16 %v656, %v652
    %v961 = vpack.c.b16 %v661, %v657
    %v962 = vpack.c.b16 %v662, %v658
    %v963 = vpack.c.b16 %v663, %v659
    %v964 = vpack.c.b16 %v664, %v660
    %v965 = vpack.c.b16 %v669, %v665
    %v966 = vpack.c.b16 %v670, %v666
    %v967 = vpack.c.b16 %v671, %v667
    %v968 = vpack.c.b16 %v672, %v668
    %v969 = vpack.c.b16 %v677, %v673
    %v970 = vpack.c.b16 %v678, %v674
    %v971 = vpack.c.b16 %v679, %v675
    %v972 = vpack.c.b16 %v680, %v676
    %v973 = vpack.c.b16 %v685, %v681
    %v974 = vpack.c.b16 %v686, %v682
    %v975 = vpack.c.b16 %v687, %v683
    %v976 = vpack.c.b16 %v688, %v684
    %v977 = vpack.c.b16 %v693, %v689
    %v978 = vpack.c.b16 %v694, %v690
    %v979 = vpack.c.b16 %v695, %v691
    %v980 = vpack.c.b16 %v696, %v692
    %v981 = vpack.c.b16 %v701, %v697
    %v982 = vpack.c.b16 %v702, %v698
    %v983 = vpack.c.b16 %v703, %v699
    %v984 = vpack.c.b16 %v704, %v700
    %v985 = vpack.c.b16 %v709, %v705
    %v986 = vpack.c.b16 %v710, %v706
    %v987 = vpack.c.b16 %v711, %v707
    %v988 = vpack.c.b16 %v712, %v708
    %v989 = vpack.c.b16 %v717, %v713
    %v990 = vpack.c.b16 %v718, %v714
    %v991 = vpack.c.b16 %v719, %v715
    %v992 = vpack.c.b16 %v720, %v716
    %v993 = vpack.c.b16 %v725, %v721
    %v994 = vpack.c.b16 %v726, %v722
    %v995 = vpack.c.b16 %v727, %v723
    %v996 = vpack.c.b16 %v728, %v724
    %v997 = vpack.c.b16 %v733, %v729
    %v998 = vpack.c.b16 %v734, %v730
    %v999 = vpack.c.b16 %v735, %v731
    %v1000 = vpack.c.b16 %v736, %v732
    %v1001 = vpack.c.b16 %v741, %v737
    %v1002 = vpack.c.b16 %v742, %v738
    %v1003 = vpack.c.b16 %v743, %v739
    %v1004 = vpack.c.b16 %v744, %v740
    %v1005 = vpack.c.b16 %v749, %v745
    %v1006 = vpack.c.b16 %v750, %v746
    %v1007 = vpack.c.b16 %v751, %v747
    %v1008 = vpack.c.b16 %v752, %v748
    %v1009 = vpack.c.b16 %v757, %v753
    %v1010 = vpack.c.b16 %v758, %v754
    %v1011 = vpack.c.b16 %v759, %v755
    %v1012 = vpack.c.b16 %v760, %v756
    %v1013 = vpack.c.b16 %v765, %v761
    %v1014 = vpack.c.b16 %v766, %v762
    %v1015 = vpack.c.b16 %v767, %v763
    %v1016 = vpack.c.b16 %v768, %v764
    %v1017 = vpack.c.b16 %v773, %v769
    %v1018 = vpack.c.b16 %v774, %v770
    %v1019 = vpack.c.b16 %v775, %v771
    %v1020 = vpack.c.b16 %v776, %v772
    %v1021 = vpack.c.b16 %v781, %v777
    %v1022 = vpack.c.b16 %v782, %v778
    %v1023 = vpack.c.b16 %v783, %v779
    %v1024 = vpack.c.b16 %v784, %v780
    %v1025 = vpack.c.b16 %v789, %v785
    %v1026 = vpack.c.b16 %v790, %v786
    %v1027 = vpack.c.b16 %v791, %v787
    %v1028 = vpack.c.b16 %v792, %v788
    %v1029 = vpack.c.b16 %v797, %v793
    %v1030 = vpack.c.b16 %v798, %v794
    %v1031 = vpack.c.b16 %v799, %v795
    %v1032 = vpack.c.b16 %v800, %v796
    %v1033 = vpack.c.b16 %v805, %v801
    %v1034 = vpack.c.b16 %v806, %v802
    %v1035 = vpack.c.b16 %v807, %v803
    %v1036 = vpack.c.b16 %v808, %v804
    %v1037 = vpack.c.b16 %v813, %v809
    %v1038 = vpack.c.b16 %v814, %v810
    %v1039 = vpack.c.b16 %v815, %v811
    %v1040 = vpack.c.b16 %v816, %v812
    %v1041 = vpack.c.b16 %v821, %v817
    %v1042 = vpack.c.b16 %v822, %v818
    %v1043 = vpack.c.b16 %v823, %v819
    %v1044 = vpack.c.b16 %v824, %v820
    %v1045 = vpack.c.b16 %v829, %v825
    %v1046 = vpack.c.b16 %v830, %v826
    %v1047 = vpack.c.b16 %v831, %v827
    %v1048 = vpack.c.b16 %v832, %v828
    %v1049 = vpack.c.b16 %v837, %v833
    %v1050 = vpack.c.b16 %v838, %v834
    %v1051 = vpack.c.b16 %v839, %v835
    %v1052 = vpack.c.b16 %v840, %v836
    %v1053 = vpack.c.b16 %v845, %v841
    %v1054 = vpack.c.b16 %v846, %v842
    %v1055 = vpack.c.b16 %v847, %v843
    %v1056 = vpack.c.b16 %v848, %v844
    %v1057 = vpack.c.b16 %v853, %v849
    %v1058 = vpack.c.b16 %v854, %v850
    %v1059 = vpack.c.b16 %v855, %v851
    %v1060 = vpack.c.b16 %v856, %v852
    %v1061 = vpack.c.b16 %v861, %v857
    %v1062 = vpack.c.b16 %v862, %v858
    %v1063 = vpack.c.b16 %v863, %v859
    %v1064 = vpack.c.b16 %v864, %v860
    %v1065 = vpack.c.b16 %v869, %v865
    %v1066 = vpack.c.b16 %v870, %v866
    %v1067 = vpack.c.b16 %v871, %v867
    %v1068 = vpack.c.b16 %v872, %v868
    %v1069 = vpack.c.b16 %v877, %v873
    %v1070 = vpack.c.b16 %v878, %v874
    %v1071 = vpack.c.b16 %v879, %v875
    %v1072 = vpack.c.b16 %v880, %v876
    %1265 = vmatprep.subr.bf16.mxu0 %v910
    %1266 = vmatpush1.bf16.msra.mxu0 %v909
    %1267 = vmatprep.subr.bf16.mxu0 %v906
    %1268 = vmatpush1.bf16.msra.mxu0 %v905
    %1269 = vmatprep.subr.bf16.mxu0 %v902
    %1270 = vmatpush1.bf16.msra.mxu0 %v901
    %1271 = vmatprep.subr.bf16.mxu0 %v898
    %1272 = vmatpush1.bf16.msra.mxu0 %v897
    %1273 = vmatprep.subr.bf16.mxu0 %v894
    %1274 = vmatpush1.bf16.msra.mxu0 %v893
    %1275 = vmatprep.subr.bf16.mxu0 %v890
    %1276 = vmatpush1.bf16.msra.mxu0 %v889
    %1277 = vmatprep.subr.bf16.mxu0 %v886
    %1278 = vmatpush1.bf16.msra.mxu0 %v885
    %1279 = vmatprep.subr.bf16.mxu0 %v882
    %1280 = vmatpush1.bf16.msra.mxu0 %v881
    %1281 = vmatprep.subr.bf16.mxu0 %v942
    %1282 = vmatpush2.bf16.msra.mxu0 %v941
    %1283 = vmatprep.subr.bf16.mxu0 %v938
    %1284 = vmatpush2.bf16.msra.mxu0 %v937
    %1285 = vmatprep.subr.bf16.mxu0 %v934
    %1286 = vmatpush2.bf16.msra.mxu0 %v933
    %1287 = vmatprep.subr.bf16.mxu0 %v930
    %1288 = vmatpush2.bf16.msra.mxu0 %v929
    %1289 = vmatprep.subr.bf16.mxu0 %v926
    %1290 = vmatpush2.bf16.msra.mxu0 %v925
    %1291 = vmatprep.subr.bf16.mxu0 %v922
    %1292 = vmatpush2.bf16.msra.mxu0 %v921
    %1293 = vmatprep.subr.bf16.mxu0 %v918
    %1294 = vmatpush2.bf16.msra.mxu0 %v917
    %1295 = vmatprep.subr.bf16.mxu0 %v914
    %1296 = vmatpush2.bf16.msra.mxu0 %v913
    %1297 = vmatprep.mubr.bf16.mxu0 %v86
    %1298 = vmatmul.mubr.bf16.gmra.mxu0 %v85
    %v1299 = vpop.f32.mrf.mxu0
    %v1300 = vadd.f32 %v288, %v1299
    %v1301 = vpop.f32.mrf.mxu0
    %v1302 = vadd.f32 %v292, %v1301
    %v1303 = vpop.f32.mrf.mxu0
    %v1304 = vpop.f32.mrf.mxu0
    %1305 = vdwg.mxu0
    %1306 = vmatprep.subr.bf16.mxu0 %v974
    %1307 = vmatpush1.bf16.msra.mxu0 %v973
    %1308 = vmatprep.subr.bf16.mxu0 %v970
    %1309 = vmatpush1.bf16.msra.mxu0 %v969
    %1310 = vmatprep.subr.bf16.mxu0 %v966
    %1311 = vmatpush1.bf16.msra.mxu0 %v965
    %1312 = vmatprep.subr.bf16.mxu0 %v962
    %1313 = vmatpush1.bf16.msra.mxu0 %v961
    %1314 = vmatprep.subr.bf16.mxu0 %v958
    %1315 = vmatpush1.bf16.msra.mxu0 %v957
    %1316 = vmatprep.subr.bf16.mxu0 %v954
    %1317 = vmatpush1.bf16.msra.mxu0 %v953
    %1318 = vmatprep.subr.bf16.mxu0 %v950
    %1319 = vmatpush1.bf16.msra.mxu0 %v949
    %1320 = vmatprep.subr.bf16.mxu0 %v946
    %1321 = vmatpush1.bf16.msra.mxu0 %v945
    %1322 = vmatprep.subr.bf16.mxu0 %v1006
    %1323 = vmatpush2.bf16.msra.mxu0 %v1005
    %1324 = vmatprep.subr.bf16.mxu0 %v1002
    %1325 = vmatpush2.bf16.msra.mxu0 %v1001
    %1326 = vmatprep.subr.bf16.mxu0 %v998
    %1327 = vmatpush2.bf16.msra.mxu0 %v997
    %1328 = vmatprep.subr.bf16.mxu0 %v994
    %1329 = vmatpush2.bf16.msra.mxu0 %v993
    %1330 = vmatprep.subr.bf16.mxu0 %v990
    %1331 = vmatpush2.bf16.msra.mxu0 %v989
    %1332 = vmatprep.subr.bf16.mxu0 %v986
    %1333 = vmatpush2.bf16.msra.mxu0 %v985
    %1334 = vmatprep.subr.bf16.mxu0 %v982
    %1335 = vmatpush2.bf16.msra.mxu0 %v981
    %1336 = vmatprep.subr.bf16.mxu0 %v978
    %1337 = vmatpush2.bf16.msra.mxu0 %v977
    %1338 = vmatprep.mubr.bf16.mxu0 %v88
    %1339 = vmatmul.mubr.bf16.gmra.mxu0 %v87
    %v1340 = vpop.f32.mrf.mxu0
    %v1341 = vadd.f32 %v1300, %v1340
    %v1342 = vpop.f32.mrf.mxu0
    %v1343 = vadd.f32 %v1302, %v1342
    %v1344 = vpop.f32.mrf.mxu0
    %v1345 = vpop.f32.mrf.mxu0
    %1346 = vdwg.mxu0
    %1347 = vmatprep.subr.bf16.mxu0 %v1038
    %1348 = vmatpush1.bf16.msra.mxu0 %v1037
    %1349 = vmatprep.subr.bf16.mxu0 %v1034
    %1350 = vmatpush1.bf16.msra.mxu0 %v1033
    %1351 = vmatprep.subr.bf16.mxu0 %v1030
    %1352 = vmatpush1.bf16.msra.mxu0 %v1029
    %1353 = vmatprep.subr.bf16.mxu0 %v1026
    %1354 = vmatpush1.bf16.msra.mxu0 %v1025
    %1355 = vmatprep.subr.bf16.mxu0 %v1022
    %1356 = vmatpush1.bf16.msra.mxu0 %v1021
    %1357 = vmatprep.subr.bf16.mxu0 %v1018
    %1358 = vmatpush1.bf16.msra.mxu0 %v1017
    %1359 = vmatprep.subr.bf16.mxu0 %v1014
    %1360 = vmatpush1.bf16.msra.mxu0 %v1013
    %1361 = vmatprep.subr.bf16.mxu0 %v1010
    %1362 = vmatpush1.bf16.msra.mxu0 %v1009
    %1363 = vmatprep.subr.bf16.mxu0 %v1070
    %1364 = vmatpush2.bf16.msra.mxu0 %v1069
    %1365 = vmatprep.subr.bf16.mxu0 %v1066
    %1366 = vmatpush2.bf16.msra.mxu0 %v1065
    %1367 = vmatprep.subr.bf16.mxu0 %v1062
    %1368 = vmatpush2.bf16.msra.mxu0 %v1061
    %1369 = vmatprep.subr.bf16.mxu0 %v1058
    %1370 = vmatpush2.bf16.msra.mxu0 %v1057
    %1371 = vmatprep.subr.bf16.mxu0 %v1054
    %1372 = vmatpush2.bf16.msra.mxu0 %v1053
    %1373 = vmatprep.subr.bf16.mxu0 %v1050
    %1374 = vmatpush2.bf16.msra.mxu0 %v1049
    %1375 = vmatprep.subr.bf16.mxu0 %v1046
    %1376 = vmatpush2.bf16.msra.mxu0 %v1045
    %1377 = vmatprep.subr.bf16.mxu0 %v1042
    %1378 = vmatpush2.bf16.msra.mxu0 %v1041
    %1379 = vmatprep.mubr.bf16.mxu0 %v90
    %1380 = vmatmul.mubr.bf16.gmra.mxu0 %v89
    %v1381 = vpop.f32.mrf.mxu0
    %v1382 = vadd.f32 %v1341, %v1381
    %v1383 = vpop.f32.mrf.mxu0
    %v1384 = vadd.f32 %v1343, %v1383
    %v1385 = vpop.f32.mrf.mxu0
    %v1386 = vpop.f32.mrf.mxu0
    %1387 = vdwg.mxu0
    %1388 = vmatprep.subr.bf16.mxu0 %v912
    %1389 = vmatpush1.bf16.msra.mxu0 %v911
    %1390 = vmatprep.subr.bf16.mxu0 %v908
    %1391 = vmatpush1.bf16.msra.mxu0 %v907
    %1392 = vmatprep.subr.bf16.mxu0 %v904
    %1393 = vmatpush1.bf16.msra.mxu0 %v903
    %1394 = vmatprep.subr.bf16.mxu0 %v900
    %1395 = vmatpush1.bf16.msra.mxu0 %v899
    %1396 = vmatprep.subr.bf16.mxu0 %v896
    %1397 = vmatpush1.bf16.msra.mxu0 %v895
    %1398 = vmatprep.subr.bf16.mxu0 %v892
    %1399 = vmatpush1.bf16.msra.mxu0 %v891
    %1400 = vmatprep.subr.bf16.mxu0 %v888
    %1401 = vmatpush1.bf16.msra.mxu0 %v887
    %1402 = vmatprep.subr.bf16.mxu0 %v884
    %1403 = vmatpush1.bf16.msra.mxu0 %v883
    %1404 = vmatprep.subr.bf16.mxu0 %v944
    %1405 = vmatpush2.bf16.msra.mxu0 %v943
    %1406 = vmatprep.subr.bf16.mxu0 %v940
    %1407 = vmatpush2.bf16.msra.mxu0 %v939
    %1408 = vmatprep.subr.bf16.mxu0 %v936
    %1409 = vmatpush2.bf16.msra.mxu0 %v935
    %1410 = vmatprep.subr.bf16.mxu0 %v932
    %1411 = vmatpush2.bf16.msra.mxu0 %v931
    %1412 = vmatprep.subr.bf16.mxu0 %v928
    %1413 = vmatpush2.bf16.msra.mxu0 %v927
    %1414 = vmatprep.subr.bf16.mxu0 %v924
    %1415 = vmatpush2.bf16.msra.mxu0 %v923
    %1416 = vmatprep.subr.bf16.mxu0 %v920
    %1417 = vmatpush2.bf16.msra.mxu0 %v919
    %1418 = vmatprep.subr.bf16.mxu0 %v916
    %1419 = vmatpush2.bf16.msra.mxu0 %v915
    %1420 = vmatprep.mubr.bf16.mxu0 %v86
    %1421 = vmatmul.mubr.bf16.gmra.mxu0 %v85
    %v1422 = vpop.f32.mrf.mxu0
    %v1423 = vadd.f32 %v296, %v1422
    %v1424 = vpop.f32.mrf.mxu0
    %v1425 = vadd.f32 %v300, %v1424
    %v1426 = vpop.f32.mrf.mxu0
    %v1427 = vpop.f32.mrf.mxu0
    %1428 = vdwg.mxu0
    %1429 = vmatprep.subr.bf16.mxu0 %v976
    %1430 = vmatpush1.bf16.msra.mxu0 %v975
    %1431 = vmatprep.subr.bf16.mxu0 %v972
    %1432 = vmatpush1.bf16.msra.mxu0 %v971
    %1433 = vmatprep.subr.bf16.mxu0 %v968
    %1434 = vmatpush1.bf16.msra.mxu0 %v967
    %1435 = vmatprep.subr.bf16.mxu0 %v964
    %1436 = vmatpush1.bf16.msra.mxu0 %v963
    %1437 = vmatprep.subr.bf16.mxu0 %v960
    %1438 = vmatpush1.bf16.msra.mxu0 %v959
    %1439 = vmatprep.subr.bf16.mxu0 %v956
    %1440 = vmatpush1.bf16.msra.mxu0 %v955
    %1441 = vmatprep.subr.bf16.mxu0 %v952
    %1442 = vmatpush1.bf16.msra.mxu0 %v951
    %1443 = vmatprep.subr.bf16.mxu0 %v948
    %1444 = vmatpush1.bf16.msra.mxu0 %v947
    %1445 = vmatprep.subr.bf16.mxu0 %v1008
    %1446 = vmatpush2.bf16.msra.mxu0 %v1007
    %1447 = vmatprep.subr.bf16.mxu0 %v1004
    %1448 = vmatpush2.bf16.msra.mxu0 %v1003
    %1449 = vmatprep.subr.bf16.mxu0 %v1000
    %1450 = vmatpush2.bf16.msra.mxu0 %v999
    %1451 = vmatprep.subr.bf16.mxu0 %v996
    %1452 = vmatpush2.bf16.msra.mxu0 %v995
    %1453 = vmatprep.subr.bf16.mxu0 %v992
    %1454 = vmatpush2.bf16.msra.mxu0 %v991
    %1455 = vmatprep.subr.bf16.mxu0 %v988
    %1456 = vmatpush2.bf16.msra.mxu0 %v987
    %1457 = vmatprep.subr.bf16.mxu0 %v984
    %1458 = vmatpush2.bf16.msra.mxu0 %v983
    %1459 = vmatprep.subr.bf16.mxu0 %v980
    %1460 = vmatpush2.bf16.msra.mxu0 %v979
    %1461 = vmatprep.mubr.bf16.mxu0 %v88
    %1462 = vmatmul.mubr.bf16.gmra.mxu0 %v87
    %v1463 = vpop.f32.mrf.mxu0
    %v1464 = vadd.f32 %v1423, %v1463
    %v1465 = vpop.f32.mrf.mxu0
    %v1466 = vadd.f32 %v1425, %v1465
    %v1467 = vpop.f32.mrf.mxu0
    %v1468 = vpop.f32.mrf.mxu0
    %1469 = vdwg.mxu0
    %1470 = vmatprep.subr.bf16.mxu0 %v1040
    %1471 = vmatpush1.bf16.msra.mxu0 %v1039
    %1472 = vmatprep.subr.bf16.mxu0 %v1036
    %1473 = vmatpush1.bf16.msra.mxu0 %v1035
    %1474 = vmatprep.subr.bf16.mxu0 %v1032
    %1475 = vmatpush1.bf16.msra.mxu0 %v1031
    %1476 = vmatprep.subr.bf16.mxu0 %v1028
    %1477 = vmatpush1.bf16.msra.mxu0 %v1027
    %1478 = vmatprep.subr.bf16.mxu0 %v1024
    %1479 = vmatpush1.bf16.msra.mxu0 %v1023
    %1480 = vmatprep.subr.bf16.mxu0 %v1020
    %1481 = vmatpush1.bf16.msra.mxu0 %v1019
    %1482 = vmatprep.subr.bf16.mxu0 %v1016
    %1483 = vmatpush1.bf16.msra.mxu0 %v1015
    %1484 = vmatprep.subr.bf16.mxu0 %v1012
    %1485 = vmatpush1.bf16.msra.mxu0 %v1011
    %1486 = vmatprep.subr.bf16.mxu0 %v1072
    %1487 = vmatpush2.bf16.msra.mxu0 %v1071
    %1488 = vmatprep.subr.bf16.mxu0 %v1068
    %1489 = vmatpush2.bf16.msra.mxu0 %v1067
    %1490 = vmatprep.subr.bf16.mxu0 %v1064
    %1491 = vmatpush2.bf16.msra.mxu0 %v1063
    %1492 = vmatprep.subr.bf16.mxu0 %v1060
    %1493 = vmatpush2.bf16.msra.mxu0 %v1059
    %1494 = vmatprep.subr.bf16.mxu0 %v1056
    %1495 = vmatpush2.bf16.msra.mxu0 %v1055
    %1496 = vmatprep.subr.bf16.mxu0 %v1052
    %1497 = vmatpush2.bf16.msra.mxu0 %v1051
    %1498 = vmatprep.subr.bf16.mxu0 %v1048
    %1499 = vmatpush2.bf16.msra.mxu0 %v1047
    %1500 = vmatprep.subr.bf16.mxu0 %v1044
    %1501 = vmatpush2.bf16.msra.mxu0 %v1043
    %1502 = vmatprep.mubr.bf16.mxu0 %v90
    %1503 = vmatmul.mubr.bf16.gmra.mxu0 %v89
    %v1504 = vpop.f32.mrf.mxu0
    %v1505 = vadd.f32 %v1464, %v1504
    %v1506 = vpop.f32.mrf.mxu0
    %v1507 = vadd.f32 %v1466, %v1506
    %v1508 = vpop.f32.mrf.mxu0
    %v1509 = vpop.f32.mrf.mxu0
    %1510 = vdwg.mxu0
    %v1511 = vmax.f32 %v1382, 0.0
    %v1512 = vmax.f32 %v1384, 0.0
    %v1513 = vmax.f32 %v1505, 0.0
    %v1514 = vmax.f32 %v1507, 0.0
    %v1515 = vpack.c.bf16 %v1511, %v1511
    %v1516 = vpack.c.bf16 %v1512, %v1512
    %v1517 = vpack.c.bf16 %v1513, %v1513
    %v1518 = vpack.c.bf16 %v1514, %v1514
    %v1519 = vld [vmem:[#allocation7] sm:$0xff]
    %v1520 = vld [vmem:[#allocation7 + $0x8] sm:$0xff]
    %v1521 = vld [vmem:[#allocation7 + $0x10] sm:$0xff]
    %v1522 = vld [vmem:[#allocation7 + $0x18] sm:$0xff]
    %v1523 = vld [vmem:[#allocation7 + $0x20] sm:$0xff]
    %v1524 = vld [vmem:[#allocation7 + $0x28] sm:$0xff]
    %v1525 = vld [vmem:[#allocation7 + $0x30] sm:$0xff]
    %v1526 = vld [vmem:[#allocation7 + $0x38] sm:$0xff]
    %v1527 = vld [vmem:[#allocation7 + $0x40] sm:$0xff]
    %v1528 = vld [vmem:[#allocation7 + $0x48] sm:$0xff]
    %v1529 = vld [vmem:[#allocation7 + $0x50] sm:$0xff]
    %v1530 = vld [vmem:[#allocation7 + $0x58] sm:$0xff]
    %v1531 = vld [vmem:[#allocation7 + $0x60] sm:$0xff]
    %v1532 = vld [vmem:[#allocation7 + $0x68] sm:$0xff]
    %v1533 = vld [vmem:[#allocation7 + $0x70] sm:$0xff]
    %v1534 = vld [vmem:[#allocation7 + $0x78] sm:$0xff]
    %v1535 = vld [vmem:[#allocation7 + $0x80] sm:$0xff]
    %v1536 = vld [vmem:[#allocation7 + $0x88] sm:$0xff]
    %v1537 = vld [vmem:[#allocation7 + $0x90] sm:$0xff]
    %v1538 = vld [vmem:[#allocation7 + $0x98] sm:$0xff]
    %v1539 = vld [vmem:[#allocation7 + $0xa0] sm:$0xff]
    %v1540 = vld [vmem:[#allocation7 + $0xa8] sm:$0xff]
    %v1541 = vld [vmem:[#allocation7 + $0xb0] sm:$0xff]
    %v1542 = vld [vmem:[#allocation7 + $0xb8] sm:$0xff]
    %v1543 = vld [vmem:[#allocation7 + $0xc0] sm:$0xff]
    %v1544 = vld [vmem:[#allocation7 + $0xc8] sm:$0xff]
    %v1545 = vld [vmem:[#allocation7 + $0xd0] sm:$0xff]
    %v1546 = vld [vmem:[#allocation7 + $0xd8] sm:$0xff]
    %v1547 = vld [vmem:[#allocation7 + $0xe0] sm:$0xff]
    %v1548 = vld [vmem:[#allocation7 + $0xe8] sm:$0xff]
    %v1549 = vld [vmem:[#allocation7 + $0xf0] sm:$0xff]
    %v1550 = vld [vmem:[#allocation7 + $0xf8] sm:$0xff]
    %v1551 = vld [vmem:[#allocation7 + $0x100] sm:$0xff]
    %v1552 = vld [vmem:[#allocation7 + $0x108] sm:$0xff]
    %v1553 = vld [vmem:[#allocation7 + $0x110] sm:$0xff]
    %v1554 = vld [vmem:[#allocation7 + $0x118] sm:$0xff]
    %v1555 = vld [vmem:[#allocation7 + $0x120] sm:$0xff]
    %v1556 = vld [vmem:[#allocation7 + $0x128] sm:$0xff]
    %v1557 = vld [vmem:[#allocation7 + $0x130] sm:$0xff]
    %v1558 = vld [vmem:[#allocation7 + $0x138] sm:$0xff]
    %v1559 = vld [vmem:[#allocation7 + $0x140] sm:$0xff]
    %v1560 = vld [vmem:[#allocation7 + $0x148] sm:$0xff]
    %v1561 = vld [vmem:[#allocation7 + $0x150] sm:$0xff]
    %v1562 = vld [vmem:[#allocation7 + $0x158] sm:$0xff]
    %v1563 = vld [vmem:[#allocation7 + $0x160] sm:$0xff]
    %v1564 = vld [vmem:[#allocation7 + $0x168] sm:$0xff]
    %v1565 = vld [vmem:[#allocation7 + $0x170] sm:$0xff]
    %v1566 = vld [vmem:[#allocation7 + $0x178] sm:$0xff]
    %v1567 = vld [vmem:[#allocation7 + $0x180] sm:$0xff]
    %v1568 = vld [vmem:[#allocation7 + $0x188] sm:$0xff]
    %v1569 = vld [vmem:[#allocation7 + $0x190] sm:$0xff]
    %v1570 = vld [vmem:[#allocation7 + $0x198] sm:$0xff]
    %v1571 = vld [vmem:[#allocation7 + $0x1a0] sm:$0xff]
    %v1572 = vld [vmem:[#allocation7 + $0x1a8] sm:$0xff]
    %v1573 = vld [vmem:[#allocation7 + $0x1b0] sm:$0xff]
    %v1574 = vld [vmem:[#allocation7 + $0x1b8] sm:$0xff]
    %v1575 = vld [vmem:[#allocation7 + $0x1c0] sm:$0xff]
    %v1576 = vld [vmem:[#allocation7 + $0x1c8] sm:$0xff]
    %v1577 = vld [vmem:[#allocation7 + $0x1d0] sm:$0xff]
    %v1578 = vld [vmem:[#allocation7 + $0x1d8] sm:$0xff]
    %v1579 = vld [vmem:[#allocation7 + $0x1e0] sm:$0xff]
    %v1580 = vld [vmem:[#allocation7 + $0x1e8] sm:$0xff]
    %v1581 = vld [vmem:[#allocation7 + $0x1f0] sm:$0xff]
    %v1582 = vld [vmem:[#allocation7 + $0x1f8] sm:$0xff]
    %v1583 = vld [vmem:[#allocation7 + $0x200] sm:$0xff]
    %v1584 = vld [vmem:[#allocation7 + $0x208] sm:$0xff]
    %v1585 = vld [vmem:[#allocation7 + $0x210] sm:$0xff]
    %v1586 = vld [vmem:[#allocation7 + $0x218] sm:$0xff]
    %v1587 = vld [vmem:[#allocation7 + $0x220] sm:$0xff]
    %v1588 = vld [vmem:[#allocation7 + $0x228] sm:$0xff]
    %v1589 = vld [vmem:[#allocation7 + $0x230] sm:$0xff]
    %v1590 = vld [vmem:[#allocation7 + $0x238] sm:$0xff]
    %v1591 = vld [vmem:[#allocation7 + $0x240] sm:$0xff]
    %v1592 = vld [vmem:[#allocation7 + $0x248] sm:$0xff]
    %v1593 = vld [vmem:[#allocation7 + $0x250] sm:$0xff]
    %v1594 = vld [vmem:[#allocation7 + $0x258] sm:$0xff]
    %v1595 = vld [vmem:[#allocation7 + $0x260] sm:$0xff]
    %v1596 = vld [vmem:[#allocation7 + $0x268] sm:$0xff]
    %v1597 = vld [vmem:[#allocation7 + $0x270] sm:$0xff]
    %v1598 = vld [vmem:[#allocation7 + $0x278] sm:$0xff]
    %v1599 = vld [vmem:[#allocation7 + $0x280] sm:$0xff]
    %v1600 = vld [vmem:[#allocation7 + $0x288] sm:$0xff]
    %v1601 = vld [vmem:[#allocation7 + $0x290] sm:$0xff]
    %v1602 = vld [vmem:[#allocation7 + $0x298] sm:$0xff]
    %v1603 = vld [vmem:[#allocation7 + $0x2a0] sm:$0xff]
    %v1604 = vld [vmem:[#allocation7 + $0x2a8] sm:$0xff]
    %v1605 = vld [vmem:[#allocation7 + $0x2b0] sm:$0xff]
    %v1606 = vld [vmem:[#allocation7 + $0x2b8] sm:$0xff]
    %v1607 = vld [vmem:[#allocation7 + $0x2c0] sm:$0xff]
    %v1608 = vld [vmem:[#allocation7 + $0x2c8] sm:$0xff]
    %v1609 = vld [vmem:[#allocation7 + $0x2d0] sm:$0xff]
    %v1610 = vld [vmem:[#allocation7 + $0x2d8] sm:$0xff]
    %v1611 = vld [vmem:[#allocation7 + $0x2e0] sm:$0xff]
    %v1612 = vld [vmem:[#allocation7 + $0x2e8] sm:$0xff]
    %v1613 = vld [vmem:[#allocation7 + $0x2f0] sm:$0xff]
    %v1614 = vld [vmem:[#allocation7 + $0x2f8] sm:$0xff]
    %v1615 = vld [vmem:[#allocation7 + $0x300] sm:$0xff]
    %v1616 = vld [vmem:[#allocation7 + $0x308] sm:$0xff]
    %v1617 = vld [vmem:[#allocation7 + $0x310] sm:$0xff]
    %v1618 = vld [vmem:[#allocation7 + $0x318] sm:$0xff]
    %v1619 = vld [vmem:[#allocation7 + $0x320] sm:$0xff]
    %v1620 = vld [vmem:[#allocation7 + $0x328] sm:$0xff]
    %v1621 = vld [vmem:[#allocation7 + $0x330] sm:$0xff]
    %v1622 = vld [vmem:[#allocation7 + $0x338] sm:$0xff]
    %v1623 = vld [vmem:[#allocation7 + $0x340] sm:$0xff]
    %v1624 = vld [vmem:[#allocation7 + $0x348] sm:$0xff]
    %v1625 = vld [vmem:[#allocation7 + $0x350] sm:$0xff]
    %v1626 = vld [vmem:[#allocation7 + $0x358] sm:$0xff]
    %v1627 = vld [vmem:[#allocation7 + $0x360] sm:$0xff]
    %v1628 = vld [vmem:[#allocation7 + $0x368] sm:$0xff]
    %v1629 = vld [vmem:[#allocation7 + $0x370] sm:$0xff]
    %v1630 = vld [vmem:[#allocation7 + $0x378] sm:$0xff]
    %v1631 = vld [vmem:[#allocation7 + $0x380] sm:$0xff]
    %v1632 = vld [vmem:[#allocation7 + $0x388] sm:$0xff]
    %v1633 = vld [vmem:[#allocation7 + $0x390] sm:$0xff]
    %v1634 = vld [vmem:[#allocation7 + $0x398] sm:$0xff]
    %v1635 = vld [vmem:[#allocation7 + $0x3a0] sm:$0xff]
    %v1636 = vld [vmem:[#allocation7 + $0x3a8] sm:$0xff]
    %v1637 = vld [vmem:[#allocation7 + $0x3b0] sm:$0xff]
    %v1638 = vld [vmem:[#allocation7 + $0x3b8] sm:$0xff]
    %v1639 = vld [vmem:[#allocation7 + $0x3c0] sm:$0xff]
    %v1640 = vld [vmem:[#allocation7 + $0x3c8] sm:$0xff]
    %v1641 = vld [vmem:[#allocation7 + $0x3d0] sm:$0xff]
    %v1642 = vld [vmem:[#allocation7 + $0x3d8] sm:$0xff]
    %v1643 = vld [vmem:[#allocation7 + $0x3e0] sm:$0xff]
    %v1644 = vld [vmem:[#allocation7 + $0x3e8] sm:$0xff]
    %v1645 = vld [vmem:[#allocation7 + $0x3f0] sm:$0xff]
    %v1646 = vld [vmem:[#allocation7 + $0x3f8] sm:$0xff]
    %v1647 = vld [vmem:[%s4] sm:$0xf]
    %v1649 = vlaneseq
    %v1650 = vshrl.u32 %v1649, 7
    %v1651 = vsub.s32 0, %v1650
    %v1652 = vrot.slane %v1647, %v1651
    %v1653 = vlaneseq
    %v1654 = vshrl.u32 %v1653, 7
    %v1655 = vsub.s32 1, %v1654
    %v1656 = vrot.slane %v1647, %v1655
    %v1657 = vlaneseq
    %v1658 = vshrl.u32 %v1657, 7
    %v1659 = vsub.s32 2, %v1658
    %v1660 = vrot.slane %v1647, %v1659
    %v1661 = vlaneseq
    %v1662 = vshrl.u32 %v1661, 7
    %v1663 = vsub.s32 3, %v1662
    %v1664 = vrot.slane %v1647, %v1663
    %v1797 = vunpack.c.l.b16 %v1519
    %v1798 = vunpack.c.h.b16 %v1519
    %v1799 = vunpack.c.l.b16 %v1520
    %v1800 = vunpack.c.h.b16 %v1520
    %v1801 = vunpack.c.l.b16 %v1521
    %v1802 = vunpack.c.h.b16 %v1521
    %v1803 = vunpack.c.l.b16 %v1522
    %v1804 = vunpack.c.h.b16 %v1522
    %v1805 = vunpack.c.l.b16 %v1523
    %v1806 = vunpack.c.h.b16 %v1523
    %v1807 = vunpack.c.l.b16 %v1524
    %v1808 = vunpack.c.h.b16 %v1524
    %v1809 = vunpack.c.l.b16 %v1525
    %v1810 = vunpack.c.h.b16 %v1525
    %v1811 = vunpack.c.l.b16 %v1526
    %v1812 = vunpack.c.h.b16 %v1526
    %v1813 = vunpack.c.l.b16 %v1527
    %v1814 = vunpack.c.h.b16 %v1527
    %v1815 = vunpack.c.l.b16 %v1528
    %v1816 = vunpack.c.h.b16 %v1528
    %v1817 = vunpack.c.l.b16 %v1529
    %v1818 = vunpack.c.h.b16 %v1529
    %v1819 = vunpack.c.l.b16 %v1530
    %v1820 = vunpack.c.h.b16 %v1530
    %v1821 = vunpack.c.l.b16 %v1531
    %v1822 = vunpack.c.h.b16 %v1531
    %v1823 = vunpack.c.l.b16 %v1532
    %v1824 = vunpack.c.h.b16 %v1532
    %v1825 = vunpack.c.l.b16 %v1533
    %v1826 = vunpack.c.h.b16 %v1533
    %v1827 = vunpack.c.l.b16 %v1534
    %v1828 = vunpack.c.h.b16 %v1534
    %v1829 = vunpack.c.l.b16 %v1535
    %v1830 = vunpack.c.h.b16 %v1535
    %v1831 = vunpack.c.l.b16 %v1536
    %v1832 = vunpack.c.h.b16 %v1536
    %v1833 = vunpack.c.l.b16 %v1537
    %v1834 = vunpack.c.h.b16 %v1537
    %v1835 = vunpack.c.l.b16 %v1538
    %v1836 = vunpack.c.h.b16 %v1538
    %v1837 = vunpack.c.l.b16 %v1539
    %v1838 = vunpack.c.h.b16 %v1539
    %v1839 = vunpack.c.l.b16 %v1540
    %v1840 = vunpack.c.h.b16 %v1540
    %v1841 = vunpack.c.l.b16 %v1541
    %v1842 = vunpack.c.h.b16 %v1541
    %v1843 = vunpack.c.l.b16 %v1542
    %v1844 = vunpack.c.h.b16 %v1542
    %v1845 = vunpack.c.l.b16 %v1543
    %v1846 = vunpack.c.h.b16 %v1543
    %v1847 = vunpack.c.l.b16 %v1544
    %v1848 = vunpack.c.h.b16 %v1544
    %v1849 = vunpack.c.l.b16 %v1545
    %v1850 = vunpack.c.h.b16 %v1545
    %v1851 = vunpack.c.l.b16 %v1546
    %v1852 = vunpack.c.h.b16 %v1546
    %v1853 = vunpack.c.l.b16 %v1547
    %v1854 = vunpack.c.h.b16 %v1547
    %v1855 = vunpack.c.l.b16 %v1548
    %v1856 = vunpack.c.h.b16 %v1548
    %v1857 = vunpack.c.l.b16 %v1549
    %v1858 = vunpack.c.h.b16 %v1549
    %v1859 = vunpack.c.l.b16 %v1550
    %v1860 = vunpack.c.h.b16 %v1550
    %v1861 = vunpack.c.l.b16 %v1551
    %v1862 = vunpack.c.h.b16 %v1551
    %v1863 = vunpack.c.l.b16 %v1552
    %v1864 = vunpack.c.h.b16 %v1552
    %v1865 = vunpack.c.l.b16 %v1553
    %v1866 = vunpack.c.h.b16 %v1553
    %v1867 = vunpack.c.l.b16 %v1554
    %v1868 = vunpack.c.h.b16 %v1554
    %v1869 = vunpack.c.l.b16 %v1555
    %v1870 = vunpack.c.h.b16 %v1555
    %v1871 = vunpack.c.l.b16 %v1556
    %v1872 = vunpack.c.h.b16 %v1556
    %v1873 = vunpack.c.l.b16 %v1557
    %v1874 = vunpack.c.h.b16 %v1557
    %v1875 = vunpack.c.l.b16 %v1558
    %v1876 = vunpack.c.h.b16 %v1558
    %v1877 = vunpack.c.l.b16 %v1559
    %v1878 = vunpack.c.h.b16 %v1559
    %v1879 = vunpack.c.l.b16 %v1560
    %v1880 = vunpack.c.h.b16 %v1560
    %v1881 = vunpack.c.l.b16 %v1561
    %v1882 = vunpack.c.h.b16 %v1561
    %v1883 = vunpack.c.l.b16 %v1562
    %v1884 = vunpack.c.h.b16 %v1562
    %v1885 = vunpack.c.l.b16 %v1563
    %v1886 = vunpack.c.h.b16 %v1563
    %v1887 = vunpack.c.l.b16 %v1564
    %v1888 = vunpack.c.h.b16 %v1564
    %v1889 = vunpack.c.l.b16 %v1565
    %v1890 = vunpack.c.h.b16 %v1565
    %v1891 = vunpack.c.l.b16 %v1566
    %v1892 = vunpack.c.h.b16 %v1566
    %v1893 = vunpack.c.l.b16 %v1567
    %v1894 = vunpack.c.h.b16 %v1567
    %v1895 = vunpack.c.l.b16 %v1568
    %v1896 = vunpack.c.h.b16 %v1568
    %v1897 = vunpack.c.l.b16 %v1569
    %v1898 = vunpack.c.h.b16 %v1569
    %v1899 = vunpack.c.l.b16 %v1570
    %v1900 = vunpack.c.h.b16 %v1570
    %v1901 = vunpack.c.l.b16 %v1571
    %v1902 = vunpack.c.h.b16 %v1571
    %v1903 = vunpack.c.l.b16 %v1572
    %v1904 = vunpack.c.h.b16 %v1572
    %v1905 = vunpack.c.l.b16 %v1573
    %v1906 = vunpack.c.h.b16 %v1573
    %v1907 = vunpack.c.l.b16 %v1574
    %v1908 = vunpack.c.h.b16 %v1574
    %v1909 = vunpack.c.l.b16 %v1575
    %v1910 = vunpack.c.h.b16 %v1575
    %v1911 = vunpack.c.l.b16 %v1576
    %v1912 = vunpack.c.h.b16 %v1576
    %v1913 = vunpack.c.l.b16 %v1577
    %v1914 = vunpack.c.h.b16 %v1577
    %v1915 = vunpack.c.l.b16 %v1578
    %v1916 = vunpack.c.h.b16 %v1578
    %v1917 = vunpack.c.l.b16 %v1579
    %v1918 = vunpack.c.h.b16 %v1579
    %v1919 = vunpack.c.l.b16 %v1580
    %v1920 = vunpack.c.h.b16 %v1580
    %v1921 = vunpack.c.l.b16 %v1581
    %v1922 = vunpack.c.h.b16 %v1581
    %v1923 = vunpack.c.l.b16 %v1582
    %v1924 = vunpack.c.h.b16 %v1582
    %v1925 = vunpack.c.l.b16 %v1583
    %v1926 = vunpack.c.h.b16 %v1583
    %v1927 = vunpack.c.l.b16 %v1584
    %v1928 = vunpack.c.h.b16 %v1584
    %v1929 = vunpack.c.l.b16 %v1585
    %v1930 = vunpack.c.h.b16 %v1585
    %v1931 = vunpack.c.l.b16 %v1586
    %v1932 = vunpack.c.h.b16 %v1586
    %v1933 = vunpack.c.l.b16 %v1587
    %v1934 = vunpack.c.h.b16 %v1587
    %v1935 = vunpack.c.l.b16 %v1588
    %v1936 = vunpack.c.h.b16 %v1588
    %v1937 = vunpack.c.l.b16 %v1589
    %v1938 = vunpack.c.h.b16 %v1589
    %v1939 = vunpack.c.l.b16 %v1590
    %v1940 = vunpack.c.h.b16 %v1590
    %v1941 = vunpack.c.l.b16 %v1591
    %v1942 = vunpack.c.h.b16 %v1591
    %v1943 = vunpack.c.l.b16 %v1592
    %v1944 = vunpack.c.h.b16 %v1592
    %v1945 = vunpack.c.l.b16 %v1593
    %v1946 = vunpack.c.h.b16 %v1593
    %v1947 = vunpack.c.l.b16 %v1594
    %v1948 = vunpack.c.h.b16 %v1594
    %v1949 = vunpack.c.l.b16 %v1595
    %v1950 = vunpack.c.h.b16 %v1595
    %v1951 = vunpack.c.l.b16 %v1596
    %v1952 = vunpack.c.h.b16 %v1596
    %v1953 = vunpack.c.l.b16 %v1597
    %v1954 = vunpack.c.h.b16 %v1597
    %v1955 = vunpack.c.l.b16 %v1598
    %v1956 = vunpack.c.h.b16 %v1598
    %v1957 = vunpack.c.l.b16 %v1599
    %v1958 = vunpack.c.h.b16 %v1599
    %v1959 = vunpack.c.l.b16 %v1600
    %v1960 = vunpack.c.h.b16 %v1600
    %v1961 = vunpack.c.l.b16 %v1601
    %v1962 = vunpack.c.h.b16 %v1601
    %v1963 = vunpack.c.l.b16 %v1602
    %v1964 = vunpack.c.h.b16 %v1602
    %v1965 = vunpack.c.l.b16 %v1603
    %v1966 = vunpack.c.h.b16 %v1603
    %v1967 = vunpack.c.l.b16 %v1604
    %v1968 = vunpack.c.h.b16 %v1604
    %v1969 = vunpack.c.l.b16 %v1605
    %v1970 = vunpack.c.h.b16 %v1605
    %v1971 = vunpack.c.l.b16 %v1606
    %v1972 = vunpack.c.h.b16 %v1606
    %v1973 = vunpack.c.l.b16 %v1607
    %v1974 = vunpack.c.h.b16 %v1607
    %v1975 = vunpack.c.l.b16 %v1608
    %v1976 = vunpack.c.h.b16 %v1608
    %v1977 = vunpack.c.l.b16 %v1609
    %v1978 = vunpack.c.h.b16 %v1609
    %v1979 = vunpack.c.l.b16 %v1610
    %v1980 = vunpack.c.h.b16 %v1610
    %v1981 = vunpack.c.l.b16 %v1611
    %v1982 = vunpack.c.h.b16 %v1611
    %v1983 = vunpack.c.l.b16 %v1612
    %v1984 = vunpack.c.h.b16 %v1612
    %v1985 = vunpack.c.l.b16 %v1613
    %v1986 = vunpack.c.h.b16 %v1613
    %v1987 = vunpack.c.l.b16 %v1614
    %v1988 = vunpack.c.h.b16 %v1614
    %v1989 = vunpack.c.l.b16 %v1615
    %v1990 = vunpack.c.h.b16 %v1615
    %v1991 = vunpack.c.l.b16 %v1616
    %v1992 = vunpack.c.h.b16 %v1616
    %v1993 = vunpack.c.l.b16 %v1617
    %v1994 = vunpack.c.h.b16 %v1617
    %v1995 = vunpack.c.l.b16 %v1618
    %v1996 = vunpack.c.h.b16 %v1618
    %v1997 = vunpack.c.l.b16 %v1619
    %v1998 = vunpack.c.h.b16 %v1619
    %v1999 = vunpack.c.l.b16 %v1620
    %v2000 = vunpack.c.h.b16 %v1620
    %v2001 = vunpack.c.l.b16 %v1621
    %v2002 = vunpack.c.h.b16 %v1621
    %v2003 = vunpack.c.l.b16 %v1622
    %v2004 = vunpack.c.h.b16 %v1622
    %v2005 = vunpack.c.l.b16 %v1623
    %v2006 = vunpack.c.h.b16 %v1623
    %v2007 = vunpack.c.l.b16 %v1624
    %v2008 = vunpack.c.h.b16 %v1624
    %v2009 = vunpack.c.l.b16 %v1625
    %v2010 = vunpack.c.h.b16 %v1625
    %v2011 = vunpack.c.l.b16 %v1626
    %v2012 = vunpack.c.h.b16 %v1626
    %v2013 = vunpack.c.l.b16 %v1627
    %v2014 = vunpack.c.h.b16 %v1627
    %v2015 = vunpack.c.l.b16 %v1628
    %v2016 = vunpack.c.h.b16 %v1628
    %v2017 = vunpack.c.l.b16 %v1629
    %v2018 = vunpack.c.h.b16 %v1629
    %v2019 = vunpack.c.l.b16 %v1630
    %v2020 = vunpack.c.h.b16 %v1630
    %v2021 = vunpack.c.l.b16 %v1631
    %v2022 = vunpack.c.h.b16 %v1631
    %v2023 = vunpack.c.l.b16 %v1632
    %v2024 = vunpack.c.h.b16 %v1632
    %v2025 = vunpack.c.l.b16 %v1633
    %v2026 = vunpack.c.h.b16 %v1633
    %v2027 = vunpack.c.l.b16 %v1634
    %v2028 = vunpack.c.h.b16 %v1634
    %v2029 = vunpack.c.l.b16 %v1635
    %v2030 = vunpack.c.h.b16 %v1635
    %v2031 = vunpack.c.l.b16 %v1636
    %v2032 = vunpack.c.h.b16 %v1636
    %v2033 = vunpack.c.l.b16 %v1637
    %v2034 = vunpack.c.h.b16 %v1637
    %v2035 = vunpack.c.l.b16 %v1638
    %v2036 = vunpack.c.h.b16 %v1638
    %v2037 = vunpack.c.l.b16 %v1639
    %v2038 = vunpack.c.h.b16 %v1639
    %v2039 = vunpack.c.l.b16 %v1640
    %v2040 = vunpack.c.h.b16 %v1640
    %v2041 = vunpack.c.l.b16 %v1641
    %v2042 = vunpack.c.h.b16 %v1641
    %v2043 = vunpack.c.l.b16 %v1642
    %v2044 = vunpack.c.h.b16 %v1642
    %v2045 = vunpack.c.l.b16 %v1643
    %v2046 = vunpack.c.h.b16 %v1643
    %v2047 = vunpack.c.l.b16 %v1644
    %v2048 = vunpack.c.h.b16 %v1644
    %v2049 = vunpack.c.l.b16 %v1645
    %v2050 = vunpack.c.h.b16 %v1645
    %v2051 = vunpack.c.l.b16 %v1646
    %v2052 = vunpack.c.h.b16 %v1646
    %v2053 = vpack.c.b16 %v1801, %v1797
    %v2054 = vpack.c.b16 %v1802, %v1798
    %v2055 = vpack.c.b16 %v1803, %v1799
    %v2056 = vpack.c.b16 %v1804, %v1800
    %v2057 = vpack.c.b16 %v1809, %v1805
    %v2058 = vpack.c.b16 %v1810, %v1806
    %v2059 = vpack.c.b16 %v1811, %v1807
    %v2060 = vpack.c.b16 %v1812, %v1808
    %v2061 = vpack.c.b16 %v1817, %v1813
    %v2062 = vpack.c.b16 %v1818, %v1814
    %v2063 = vpack.c.b16 %v1819, %v1815
    %v2064 = vpack.c.b16 %v1820, %v1816
    %v2065 = vpack.c.b16 %v1825, %v1821
    %v2066 = vpack.c.b16 %v1826, %v1822
    %v2067 = vpack.c.b16 %v1827, %v1823
    %v2068 = vpack.c.b16 %v1828, %v1824
    %v2069 = vpack.c.b16 %v1833, %v1829
    %v2070 = vpack.c.b16 %v1834, %v1830
    %v2071 = vpack.c.b16 %v1835, %v1831
    %v2072 = vpack.c.b16 %v1836, %v1832
    %v2073 = vpack.c.b16 %v1841, %v1837
    %v2074 = vpack.c.b16 %v1842, %v1838
    %v2075 = vpack.c.b16 %v1843, %v1839
    %v2076 = vpack.c.b16 %v1844, %v1840
    %v2077 = vpack.c.b16 %v1849, %v1845
    %v2078 = vpack.c.b16 %v1850, %v1846
    %v2079 = vpack.c.b16 %v1851, %v1847
    %v2080 = vpack.c.b16 %v1852, %v1848
    %v2081 = vpack.c.b16 %v1857, %v1853
    %v2082 = vpack.c.b16 %v1858, %v1854
    %v2083 = vpack.c.b16 %v1859, %v1855
    %v2084 = vpack.c.b16 %v1860, %v1856
    %v2085 = vpack.c.b16 %v1865, %v1861
    %v2086 = vpack.c.b16 %v1866, %v1862
    %v2087 = vpack.c.b16 %v1867, %v1863
    %v2088 = vpack.c.b16 %v1868, %v1864
    %v2089 = vpack.c.b16 %v1873, %v1869
    %v2090 = vpack.c.b16 %v1874, %v1870
    %v2091 = vpack.c.b16 %v1875, %v1871
    %v2092 = vpack.c.b16 %v1876, %v1872
    %v2093 = vpack.c.b16 %v1881, %v1877
    %v2094 = vpack.c.b16 %v1882, %v1878
    %v2095 = vpack.c.b16 %v1883, %v1879
    %v2096 = vpack.c.b16 %v1884, %v1880
    %v2097 = vpack.c.b16 %v1889, %v1885
    %v2098 = vpack.c.b16 %v1890, %v1886
    %v2099 = vpack.c.b16 %v1891, %v1887
    %v2100 = vpack.c.b16 %v1892, %v1888
    %v2101 = vpack.c.b16 %v1897, %v1893
    %v2102 = vpack.c.b16 %v1898, %v1894
    %v2103 = vpack.c.b16 %v1899, %v1895
    %v2104 = vpack.c.b16 %v1900, %v1896
    %v2105 = vpack.c.b16 %v1905, %v1901
    %v2106 = vpack.c.b16 %v1906, %v1902
    %v2107 = vpack.c.b16 %v1907, %v1903
    %v2108 = vpack.c.b16 %v1908, %v1904
    %v2109 = vpack.c.b16 %v1913, %v1909
    %v2110 = vpack.c.b16 %v1914, %v1910
    %v2111 = vpack.c.b16 %v1915, %v1911
    %v2112 = vpack.c.b16 %v1916, %v1912
    %v2113 = vpack.c.b16 %v1921, %v1917
    %v2114 = vpack.c.b16 %v1922, %v1918
    %v2115 = vpack.c.b16 %v1923, %v1919
    %v2116 = vpack.c.b16 %v1924, %v1920
    %v2117 = vpack.c.b16 %v1929, %v1925
    %v2118 = vpack.c.b16 %v1930, %v1926
    %v2119 = vpack.c.b16 %v1931, %v1927
    %v2120 = vpack.c.b16 %v1932, %v1928
    %v2121 = vpack.c.b16 %v1937, %v1933
    %v2122 = vpack.c.b16 %v1938, %v1934
    %v2123 = vpack.c.b16 %v1939, %v1935
    %v2124 = vpack.c.b16 %v1940, %v1936
    %v2125 = vpack.c.b16 %v1945, %v1941
    %v2126 = vpack.c.b16 %v1946, %v1942
    %v2127 = vpack.c.b16 %v1947, %v1943
    %v2128 = vpack.c.b16 %v1948, %v1944
    %v2129 = vpack.c.b16 %v1953, %v1949
    %v2130 = vpack.c.b16 %v1954, %v1950
    %v2131 = vpack.c.b16 %v1955, %v1951
    %v2132 = vpack.c.b16 %v1956, %v1952
    %v2133 = vpack.c.b16 %v1961, %v1957
    %v2134 = vpack.c.b16 %v1962, %v1958
    %v2135 = vpack.c.b16 %v1963, %v1959
    %v2136 = vpack.c.b16 %v1964, %v1960
    %v2137 = vpack.c.b16 %v1969, %v1965
    %v2138 = vpack.c.b16 %v1970, %v1966
    %v2139 = vpack.c.b16 %v1971, %v1967
    %v2140 = vpack.c.b16 %v1972, %v1968
    %v2141 = vpack.c.b16 %v1977, %v1973
    %v2142 = vpack.c.b16 %v1978, %v1974
    %v2143 = vpack.c.b16 %v1979, %v1975
    %v2144 = vpack.c.b16 %v1980, %v1976
    %v2145 = vpack.c.b16 %v1985, %v1981
    %v2146 = vpack.c.b16 %v1986, %v1982
    %v2147 = vpack.c.b16 %v1987, %v1983
    %v2148 = vpack.c.b16 %v1988, %v1984
    %v2149 = vpack.c.b16 %v1993, %v1989
    %v2150 = vpack.c.b16 %v1994, %v1990
    %v2151 = vpack.c.b16 %v1995, %v1991
    %v2152 = vpack.c.b16 %v1996, %v1992
    %v2153 = vpack.c.b16 %v2001, %v1997
    %v2154 = vpack.c.b16 %v2002, %v1998
    %v2155 = vpack.c.b16 %v2003, %v1999
    %v2156 = vpack.c.b16 %v2004, %v2000
    %v2157 = vpack.c.b16 %v2009, %v2005
    %v2158 = vpack.c.b16 %v2010, %v2006
    %v2159 = vpack.c.b16 %v2011, %v2007
    %v2160 = vpack.c.b16 %v2012, %v2008
    %v2161 = vpack.c.b16 %v2017, %v2013
    %v2162 = vpack.c.b16 %v2018, %v2014
    %v2163 = vpack.c.b16 %v2019, %v2015
    %v2164 = vpack.c.b16 %v2020, %v2016
    %v2165 = vpack.c.b16 %v2025, %v2021
    %v2166 = vpack.c.b16 %v2026, %v2022
    %v2167 = vpack.c.b16 %v2027, %v2023
    %v2168 = vpack.c.b16 %v2028, %v2024
    %v2169 = vpack.c.b16 %v2033, %v2029
    %v2170 = vpack.c.b16 %v2034, %v2030
    %v2171 = vpack.c.b16 %v2035, %v2031
    %v2172 = vpack.c.b16 %v2036, %v2032
    %v2173 = vpack.c.b16 %v2041, %v2037
    %v2174 = vpack.c.b16 %v2042, %v2038
    %v2175 = vpack.c.b16 %v2043, %v2039
    %v2176 = vpack.c.b16 %v2044, %v2040
    %v2177 = vpack.c.b16 %v2049, %v2045
    %v2178 = vpack.c.b16 %v2050, %v2046
    %v2179 = vpack.c.b16 %v2051, %v2047
    %v2180 = vpack.c.b16 %v2052, %v2048
    %2309 = vmatprep.subr.bf16.mxu0 %v2082
    %2310 = vmatpush1.bf16.msra.mxu0 %v2081
    %2311 = vmatprep.subr.bf16.mxu0 %v2078
    %2312 = vmatpush1.bf16.msra.mxu0 %v2077
    %2313 = vmatprep.subr.bf16.mxu0 %v2074
    %2314 = vmatpush1.bf16.msra.mxu0 %v2073
    %2315 = vmatprep.subr.bf16.mxu0 %v2070
    %2316 = vmatpush1.bf16.msra.mxu0 %v2069
    %2317 = vmatprep.subr.bf16.mxu0 %v2066
    %2318 = vmatpush1.bf16.msra.mxu0 %v2065
    %2319 = vmatprep.subr.bf16.mxu0 %v2062
    %2320 = vmatpush1.bf16.msra.mxu0 %v2061
    %2321 = vmatprep.subr.bf16.mxu0 %v2058
    %2322 = vmatpush1.bf16.msra.mxu0 %v2057
    %2323 = vmatprep.subr.bf16.mxu0 %v2054
    %2324 = vmatpush1.bf16.msra.mxu0 %v2053
    %2325 = vmatprep.subr.bf16.mxu0 %v2114
    %2326 = vmatpush2.bf16.msra.mxu0 %v2113
    %2327 = vmatprep.subr.bf16.mxu0 %v2110
    %2328 = vmatpush2.bf16.msra.mxu0 %v2109
    %2329 = vmatprep.subr.bf16.mxu0 %v2106
    %2330 = vmatpush2.bf16.msra.mxu0 %v2105
    %2331 = vmatprep.subr.bf16.mxu0 %v2102
    %2332 = vmatpush2.bf16.msra.mxu0 %v2101
    %2333 = vmatprep.subr.bf16.mxu0 %v2098
    %2334 = vmatpush2.bf16.msra.mxu0 %v2097
    %2335 = vmatprep.subr.bf16.mxu0 %v2094
    %2336 = vmatpush2.bf16.msra.mxu0 %v2093
    %2337 = vmatprep.subr.bf16.mxu0 %v2090
    %2338 = vmatpush2.bf16.msra.mxu0 %v2089
    %2339 = vmatprep.subr.bf16.mxu0 %v2086
    %2340 = vmatpush2.bf16.msra.mxu0 %v2085
    %2341 = vmatprep.mubr.bf16.mxu0 %v1516
    %2342 = vmatmul.mubr.bf16.gmra.mxu0 %v1515
    %v2343 = vpop.f32.mrf.mxu0
    %v2344 = vadd.f32 %v1652, %v2343
    %v2345 = vpop.f32.mrf.mxu0
    %v2346 = vadd.f32 %v1656, %v2345
    %v2347 = vpop.f32.mrf.mxu0
    %v2348 = vpop.f32.mrf.mxu0
    %2349 = vdwg.mxu0
    %2350 = vmatprep.subr.bf16.mxu0 %v2146
    %2351 = vmatpush1.bf16.msra.mxu0 %v2145
    %2352 = vmatprep.subr.bf16.mxu0 %v2142
    %2353 = vmatpush1.bf16.msra.mxu0 %v2141
    %2354 = vmatprep.subr.bf16.mxu0 %v2138
    %2355 = vmatpush1.bf16.msra.mxu0 %v2137
    %2356 = vmatprep.subr.bf16.mxu0 %v2134
    %2357 = vmatpush1.bf16.msra.mxu0 %v2133
    %2358 = vmatprep.subr.bf16.mxu0 %v2130
    %2359 = vmatpush1.bf16.msra.mxu0 %v2129
    %2360 = vmatprep.subr.bf16.mxu0 %v2126
    %2361 = vmatpush1.bf16.msra.mxu0 %v2125
    %2362 = vmatprep.subr.bf16.mxu0 %v2122
    %2363 = vmatpush1.bf16.msra.mxu0 %v2121
    %2364 = vmatprep.subr.bf16.mxu0 %v2118
    %2365 = vmatpush1.bf16.msra.mxu0 %v2117
    %2366 = vmatprep.subr.bf16.mxu0 %v2178
    %2367 = vmatpush2.bf16.msra.mxu0 %v2177
    %2368 = vmatprep.subr.bf16.mxu0 %v2174
    %2369 = vmatpush2.bf16.msra.mxu0 %v2173
    %2370 = vmatprep.subr.bf16.mxu0 %v2170
    %2371 = vmatpush2.bf16.msra.mxu0 %v2169
    %2372 = vmatprep.subr.bf16.mxu0 %v2166
    %2373 = vmatpush2.bf16.msra.mxu0 %v2165
    %2374 = vmatprep.subr.bf16.mxu0 %v2162
    %2375 = vmatpush2.bf16.msra.mxu0 %v2161
    %2376 = vmatprep.subr.bf16.mxu0 %v2158
    %2377 = vmatpush2.bf16.msra.mxu0 %v2157
    %2378 = vmatprep.subr.bf16.mxu0 %v2154
    %2379 = vmatpush2.bf16.msra.mxu0 %v2153
    %2380 = vmatprep.subr.bf16.mxu0 %v2150
    %2381 = vmatpush2.bf16.msra.mxu0 %v2149
    %2382 = vmatprep.mubr.bf16.mxu0 %v1518
    %2383 = vmatmul.mubr.bf16.gmra.mxu0 %v1517
    %v2384 = vpop.f32.mrf.mxu0
    %v2385 = vadd.f32 %v2344, %v2384
    %v2386 = vpop.f32.mrf.mxu0
    %v2387 = vadd.f32 %v2346, %v2386
    %v2388 = vpop.f32.mrf.mxu0
    %v2389 = vpop.f32.mrf.mxu0
    %2390 = vdwg.mxu0
    %2391 = vmatprep.subr.bf16.mxu0 %v2084
    %2392 = vmatpush1.bf16.msra.mxu0 %v2083
    %2393 = vmatprep.subr.bf16.mxu0 %v2080
    %2394 = vmatpush1.bf16.msra.mxu0 %v2079
    %2395 = vmatprep.subr.bf16.mxu0 %v2076
    %2396 = vmatpush1.bf16.msra.mxu0 %v2075
    %2397 = vmatprep.subr.bf16.mxu0 %v2072
    %2398 = vmatpush1.bf16.msra.mxu0 %v2071
    %2399 = vmatprep.subr.bf16.mxu0 %v2068
    %2400 = vmatpush1.bf16.msra.mxu0 %v2067
    %2401 = vmatprep.subr.bf16.mxu0 %v2064
    %2402 = vmatpush1.bf16.msra.mxu0 %v2063
    %2403 = vmatprep.subr.bf16.mxu0 %v2060
    %2404 = vmatpush1.bf16.msra.mxu0 %v2059
    %2405 = vmatprep.subr.bf16.mxu0 %v2056
    %2406 = vmatpush1.bf16.msra.mxu0 %v2055
    %2407 = vmatprep.subr.bf16.mxu0 %v2116
    %2408 = vmatpush2.bf16.msra.mxu0 %v2115
    %2409 = vmatprep.subr.bf16.mxu0 %v2112
    %2410 = vmatpush2.bf16.msra.mxu0 %v2111
    %2411 = vmatprep.subr.bf16.mxu0 %v2108
    %2412 = vmatpush2.bf16.msra.mxu0 %v2107
    %2413 = vmatprep.subr.bf16.mxu0 %v2104
    %2414 = vmatpush2.bf16.msra.mxu0 %v2103
    %2415 = vmatprep.subr.bf16.mxu0 %v2100
    %2416 = vmatpush2.bf16.msra.mxu0 %v2099
    %2417 = vmatprep.subr.bf16.mxu0 %v2096
    %2418 = vmatpush2.bf16.msra.mxu0 %v2095
    %2419 = vmatprep.subr.bf16.mxu0 %v2092
    %2420 = vmatpush2.bf16.msra.mxu0 %v2091
    %2421 = vmatprep.subr.bf16.mxu0 %v2088
    %2422 = vmatpush2.bf16.msra.mxu0 %v2087
    %2423 = vmatprep.mubr.bf16.mxu0 %v1516
    %2424 = vmatmul.mubr.bf16.gmra.mxu0 %v1515
    %v2425 = vpop.f32.mrf.mxu0
    %v2426 = vadd.f32 %v1660, %v2425
    %v2427 = vpop.f32.mrf.mxu0
    %v2428 = vadd.f32 %v1664, %v2427
    %v2429 = vpop.f32.mrf.mxu0
    %v2430 = vpop.f32.mrf.mxu0
    %2431 = vdwg.mxu0
    %2432 = vmatprep.subr.bf16.mxu0 %v2148
    %2433 = vmatpush1.bf16.msra.mxu0 %v2147
    %2434 = vmatprep.subr.bf16.mxu0 %v2144
    %2435 = vmatpush1.bf16.msra.mxu0 %v2143
    %2436 = vmatprep.subr.bf16.mxu0 %v2140
    %2437 = vmatpush1.bf16.msra.mxu0 %v2139
    %2438 = vmatprep.subr.bf16.mxu0 %v2136
    %2439 = vmatpush1.bf16.msra.mxu0 %v2135
    %2440 = vmatprep.subr.bf16.mxu0 %v2132
    %2441 = vmatpush1.bf16.msra.mxu0 %v2131
    %2442 = vmatprep.subr.bf16.mxu0 %v2128
    %2443 = vmatpush1.bf16.msra.mxu0 %v2127
    %2444 = vmatprep.subr.bf16.mxu0 %v2124
    %2445 = vmatpush1.bf16.msra.mxu0 %v2123
    %2446 = vmatprep.subr.bf16.mxu0 %v2120
    %2447 = vmatpush1.bf16.msra.mxu0 %v2119
    %2448 = vmatprep.subr.bf16.mxu0 %v2180
    %2449 = vmatpush2.bf16.msra.mxu0 %v2179
    %2450 = vmatprep.subr.bf16.mxu0 %v2176
    %2451 = vmatpush2.bf16.msra.mxu0 %v2175
    %2452 = vmatprep.subr.bf16.mxu0 %v2172
    %2453 = vmatpush2.bf16.msra.mxu0 %v2171
    %2454 = vmatprep.subr.bf16.mxu0 %v2168
    %2455 = vmatpush2.bf16.msra.mxu0 %v2167
    %2456 = vmatprep.subr.bf16.mxu0 %v2164
    %2457 = vmatpush2.bf16.msra.mxu0 %v2163
    %2458 = vmatprep.subr.bf16.mxu0 %v2160
    %2459 = vmatpush2.bf16.msra.mxu0 %v2159
    %2460 = vmatprep.subr.bf16.mxu0 %v2156
    %2461 = vmatpush2.bf16.msra.mxu0 %v2155
    %2462 = vmatprep.subr.bf16.mxu0 %v2152
    %2463 = vmatpush2.bf16.msra.mxu0 %v2151
    %2464 = vmatprep.mubr.bf16.mxu0 %v1518
    %2465 = vmatmul.mubr.bf16.gmra.mxu0 %v1517
    %v2466 = vpop.f32.mrf.mxu0
    %v2467 = vadd.f32 %v2426, %v2466
    %v2468 = vpop.f32.mrf.mxu0
    %v2469 = vadd.f32 %v2428, %v2468
    %v2470 = vpop.f32.mrf.mxu0
    %v2471 = vpop.f32.mrf.mxu0
    %2472 = vdwg.mxu0
    %v2473 = vmax.f32 %v2385, 0.0
    %v2474 = vmax.f32 %v2387, 0.0
    %v2475 = vmax.f32 %v2467, 0.0
    %v2476 = vmax.f32 %v2469, 0.0
    %v2477 = vld [vmem:[#allocation8] sm:$0xf]
    %v2479 = vlaneseq
    %v2480 = vshrl.u32 %v2479, 7
    %v2481 = vsub.s32 0, %v2480
    %v2482 = vrot.slane %v2477, %v2481
    %v2483 = vlaneseq
    %v2484 = vshrl.u32 %v2483, 7
    %v2485 = vsub.s32 1, %v2484
    %v2486 = vrot.slane %v2477, %v2485
    %v2487 = vlaneseq
    %v2488 = vshrl.u32 %v2487, 7
    %v2489 = vsub.s32 2, %v2488
    %v2490 = vrot.slane %v2477, %v2489
    %v2491 = vlaneseq
    %v2492 = vshrl.u32 %v2491, 7
    %v2493 = vsub.s32 3, %v2492
    %v2494 = vrot.slane %v2477, %v2493
    %v2499 = vmul.f32 %v2473, %v2482
    %v2500 = vmul.f32 %v2474, %v2486
    %v2501 = vmul.f32 %v2475, %v2490
    %v2502 = vmul.f32 %v2476, %v2494
    %v2503 = vadd.f32 %v2499, %v2500
    %v2504 = vadd.f32 %v2503, %v2501
    %v2505 = vadd.f32 %v2504, %v2502
    %2506 = vadd.xlane.f32.xlu0 %v2505
    %v2507 = vpop.xlane.xlu0 %2506
    %v2508 = vld [vmem:[#allocation2] sm:$0x1]
    %v2510 = vlaneseq
    %v2511 = vshrl.u32 %v2510, 7
    %v2512 = vsub.s32 0, %v2511
    %v2513 = vrot.slane %v2508, %v2512
    %v2515 = vadd.f32 %v2507, %v2513
    %vm2516 = vcmask 7168
    %2517 = vst.msk [vmem:[%s7] sm:$0xff] %vm2516, %v2515
    // Predicated region
    $region46: #{tpu_custom_call.1} parent=1 // pred_check
      _
    $region47: #{tpu_custom_call.1} parent=1 // pred_check_branch
      %2519 = sbr.rel (0) target = $region49
    $region48: #{tpu_custom_call.1} parent=1 // pred_region
      _
    $region49: #{tpu_custom_call.1} parent=1 // pred_fallthru
      _
    // Predicated region
    $region50: #{tpu_custom_call.1} parent=1 // pred_check
      _
    $region51: #{tpu_custom_call.1} parent=1 // pred_check_branch
      %2521 = sbr.rel (0) target = $region53
    $region52: #{tpu_custom_call.1} parent=1 // pred_region
      _
    $region53: #{tpu_custom_call.1} parent=1 // pred_fallthru
      _
    %2522 = vsyncpa [#allocation4], 1
    %2523 = vsyncpa [#allocation6], 1
    %2524 = vsyncpa [#allocation9], 1

</llo_original>
